<compile_context>
chip_gen: v7x
topology: tpu7x:2x2x1
jax: 0.10.0
libtpu: 0.0.40
codegen_flags: <defaults>
</compile_context>

<pallas_src>
import functools

import numpy as np
import jax
import jax.numpy as jnp
from jax import lax
from jax.experimental import pallas as pl
from jax.experimental.pallas import tpu as pltpu


def _conv2_boundary_masks(H, W):
    """(9, H*W) f32: mask[dy*3+dx, h*W+w] = 1 iff tap (h+dy-1, w+dx-1) is in-bounds."""
    m = np.zeros((9, H, W), np.float32)
    for dy in range(3):
        for dx in range(3):
            r, c = dy - 1, dx - 1
            hs = slice(max(0, -r), min(H, H - r))
            ws = slice(max(0, -c), min(W, W - c))
            m[dy * 3 + dx, hs, ws] = 1.0
    return jnp.asarray(m.reshape(9, H * W))


def basic_block_kernel(H, W, p1_ref, xres_ref, w1_ref, w2_ref,
                       b1_ref, alpha_ref, b2_ref, mask_ref, o_ref):
    # p1_ref   : (9*C0, H*W) bf16  conv1 im2col patches (channels-major, spatial on lanes)
    # xres_ref : (C0,  H*W)  f32   raw input, for residual (dim_match=True)
    # w1_ref   : (C1, 9*C0)  bf16  conv1 weights, (dy,dx,ci) flattened, BN1 scale folded
    # w2_ref   : (C2, 9*C1)  bf16  conv2 weights, (dy,dx,c1) flattened, BN2 scale folded
    # b1_ref   : (C1, 1)     f32   BN1 bias
    # alpha_ref: (C1, 1)     f32   PReLU per-channel slope
    # b2_ref   : (C2, 1)     f32   BN2 bias
    # mask_ref : (9, H*W)    f32   conv2 zero-pad boundary masks
    # o_ref    : (C2, H*W)   f32   output (NCHW layout falls out for free)
    HW = H * W

    # ---- conv1: one MXU matmul with the spatial dim (H*W) on lanes ----
    acc1 = jnp.dot(w1_ref[...], p1_ref[...], preferred_element_type=jnp.float32)

    # ---- BN1 bias (scale folded into w1) + PReLU, in f32 ----
    y1 = acc1 + b1_ref[...]
    y1 = jnp.where(y1 > 0, y1, alpha_ref[...] * y1)

    # ---- conv2 im2col built in-register: lane roll (XLU) + boundary mask (VPU) ----
    # patches2[(dy*3+dx)*C1 + c, h*W+w] = y1_padded[c, h+dy, w+dx]
    blocks = []
    for dy in range(3):
        for dx in range(3):
            k = dy * 3 + dx
            s = (dy - 1) * W + (dx - 1)
            rolled = y1 if s == 0 else pltpu.roll(y1, shift=(-s) % HW, axis=1)
            blocks.append((rolled * mask_ref[k:k + 1, :]).astype(jnp.bfloat16))
    patches2 = jnp.concatenate(blocks, axis=0)            # (9*C1, H*W) bf16

    # ---- conv2: one MXU matmul; BN2 bias + residual epilogue in f32 ----
    acc2 = jnp.dot(w2_ref[...], patches2, preferred_element_type=jnp.float32)
    o_ref[...] = acc2 + b2_ref[...] + xres_ref[...]       # lane-dense (C2, 256) store


def basic_block_forward(x_nchw, params):
    """x_nchw: (N, C0, H, W) float32. Returns (N, C2, H, W)."""
    N, C0, H, W = x_nchw.shape
    w1, w2 = params["w1"], params["w2"]          # HWIO: (3,3,C0,C1), (3,3,C1,C2)
    C1, C2 = w1.shape[3], w2.shape[3]
    assert C0 == C2, "residual add requires layer_number[0] == layer_number[2]"
    assert C1 == C2, "module applies BatchNorm2d(layer_number[1]) to conv2 output"
    HW = H * W

    x = x_nchw.astype(jnp.float32)

    # BN0 applied in the wrapper (fuses with pad + im2col in XLA).
    # nn.Conv2d pads AFTER BatchNorm, so zero-padding the BN'd tensor is exact.
    x_bn = x * params["s0"][None, :, None, None] + params["b0"][None, :, None, None]
    x_pad = jnp.pad(x_bn, ((0, 0), (0, 0), (1, 1), (1, 1)))          # (N,C0,H+2,W+2)

    # conv1 im2col in the wrapper, channels-major:
    # patches1[n, (dy*3+dx)*C0 + ci, h*W+w] = x_pad[n, ci, h+dy, w+dx]
    cols = [x_pad[:, :, dy:dy + H, dx:dx + W] for dy in range(3) for dx in range(3)]
    patches1 = jnp.concatenate(cols, axis=1).reshape(N, 9 * C0, HW).astype(jnp.bfloat16)

    # raw (pre-BN0) input, channels-major flattened, for the residual (dim_match=True)
    x_res = x.reshape(N, C0, HW)

    # Fold BN1/BN2 scales into the conv weights; flatten HWIO -> (Cout, 9*Cin)
    # in (dy, dx, cin) order, matching the patch layouts above; cast to bf16.
    w1t = jnp.transpose(w1 * params["s1"], (3, 0, 1, 2)).reshape(C1, 9 * C0).astype(jnp.bfloat16)
    w2t = jnp.transpose(w2 * params["s2"], (3, 0, 1, 2)).reshape(C2, 9 * C1).astype(jnp.bfloat16)
    b1 = params["b1"].reshape(C1, 1)
    alpha = params["alpha"].reshape(C1, 1)
    b2 = params["b2"].reshape(C2, 1)
    masks = _conv2_boundary_masks(H, W)                               # (9, HW) f32

    kernel = functools.partial(basic_block_kernel, H, W)
    out = pl.pallas_call(
        kernel,
        out_shape=jax.ShapeDtypeStruct((N, C2, HW), jnp.float32),
        grid_spec=pltpu.PrefetchScalarGridSpec(
            num_scalar_prefetch=0,
            grid=(N,),
            in_specs=[
                pl.BlockSpec((pl.Squeezed(), 9 * C0, HW), lambda n: (n, 0, 0)),
                pl.BlockSpec((pl.Squeezed(), C0, HW), lambda n: (n, 0, 0)),
                pl.BlockSpec((C1, 9 * C0), lambda n: (0, 0)),
                pl.BlockSpec((C2, 9 * C1), lambda n: (0, 0)),
                pl.BlockSpec((C1, 1), lambda n: (0, 0)),
                pl.BlockSpec((C1, 1), lambda n: (0, 0)),
                pl.BlockSpec((C2, 1), lambda n: (0, 0)),
                pl.BlockSpec((9, HW), lambda n: (0, 0)),
            ],
            out_specs=pl.BlockSpec((pl.Squeezed(), C2, HW), lambda n: (n, 0, 0)),
        ),
        compiler_params=pltpu.CompilerParams(
            dimension_semantics=("parallel",)),
    )(patches1, x_res, w1t, w2t, b1, alpha, b2, masks)

    return out.reshape(N, C2, H, W)                                   # already NCHW


def _folded_bn(kg, kb, km, kv, c, eps=2e-5):
    gamma = 1.0 + 0.1 * jax.random.normal(kg, (c,), jnp.float32)
    beta = 0.1 * jax.random.normal(kb, (c,), jnp.float32)
    mean = 0.1 * jax.random.normal(km, (c,), jnp.float32)
    var = 1.0 + 0.1 * jax.random.uniform(kv, (c,), jnp.float32)
    scale = gamma / jnp.sqrt(var + eps)
    bias = beta - mean * scale
    return scale, bias                               # (c,), (c,)


def init_params(key, layer_number):
    c0, c1, c2 = layer_number
    ks = jax.random.split(key, 15)
    s0, b0 = _folded_bn(ks[0], ks[1], ks[2], ks[3], c0)
    s1, b1 = _folded_bn(ks[4], ks[5], ks[6], ks[7], c1)
    # note: the module's last main-path BN is BatchNorm2d(layer_number[1])
    # applied to layer_number[2] channels -> requires c1 == c2.
    s2, b2 = _folded_bn(ks[8], ks[9], ks[10], ks[11], c2)
    w1 = 0.1 * jax.random.normal(ks[12], (3, 3, c0, c1), jnp.float32)   # HWIO
    w2 = 0.1 * jax.random.normal(ks[13], (3, 3, c1, c2), jnp.float32)   # HWIO
    alpha = 0.25 + 0.05 * jax.random.normal(ks[14], (c1,), jnp.float32)
    return dict(w1=w1, w2=w2, s0=s0, b0=b0, s1=s1, b1=b1,
                alpha=alpha, s2=s2, b2=b2)


def reference_forward(x_nchw, params):
    """Pure-JAX f32 reference (same eval-mode BN folding, no weight folding)."""
    x = jnp.transpose(x_nchw, (0, 2, 3, 1)).astype(jnp.float32)      # NHWC
    dn = ("NHWC", "HWIO", "NHWC")
    y = x * params["s0"] + params["b0"]
    y = lax.conv_general_dilated(y, params["w1"], (1, 1), "SAME",
                                 dimension_numbers=dn)
    y = y * params["s1"] + params["b1"]
    y = jnp.where(y > 0, y, params["alpha"] * y)
    y = lax.conv_general_dilated(y, params["w2"], (1, 1), "SAME",
                                 dimension_numbers=dn)
    y = y * params["s2"] + params["b2"]
    y = y + x
    return jnp.transpose(y, (0, 3, 1, 2))                            # NCHW


if __name__ == "__main__":
    key = jax.random.PRNGKey(0)
    kx, kp = jax.random.split(key)

    layer_number = (32, 32, 32)          # (C0, C1, C2); residual requires C0==C2
    N, H, W = 2, 16, 16
    x = jax.random.normal(kx, (N, layer_number[0], H, W), jnp.float32)  # NCHW
    params = init_params(kp, layer_number)

    out = jax.block_until_ready(basic_block_forward(x, params))
    ref = jax.block_until_ready(reference_forward(x, params))

    assert out.shape == (N, layer_number[2], H, W)
    max_err = float(jnp.max(jnp.abs(out - ref)))
    # bf16 MXU operands (f32 accumulation) -> loosened tolerance vs. the f32 reference.
    assert jnp.allclose(out, ref, rtol=2e-2, atol=1e-1), max_err

    print("KERNEL_OK")
</pallas_src>

<mosaic_0001>
module attributes {stable_mosaic.version = 11 : i64} {
  func.func @basic_block_kernel(%arg0: i32, %arg1: memref<1x288x256xbf16, #tpu.memory_space<vmem>>, %arg2: memref<1x32x256xf32, #tpu.memory_space<vmem>>, %arg3: memref<32x288xbf16, #tpu.memory_space<vmem>>, %arg4: memref<32x288xbf16, #tpu.memory_space<vmem>>, %arg5: memref<32x1xf32, #tpu.memory_space<vmem>>, %arg6: memref<32x1xf32, #tpu.memory_space<vmem>>, %arg7: memref<32x1xf32, #tpu.memory_space<vmem>>, %arg8: memref<9x256xf32, #tpu.memory_space<vmem>>, %arg9: memref<1x32x256xf32, #tpu.memory_space<vmem>>) attributes {dimension_semantics = [#tpu.dimension_semantics<parallel>], iteration_bounds = array<i64: 2>, scalar_prefetch = 0 : i64, scratch_operands = 0 : i64, tpu.core_type = #tpu.core_type<tc>, window_params = [{transform_indices = @transform_0, window_bounds = array<i64: 1, 288, 256>}, {transform_indices = @transform_1, window_bounds = array<i64: 1, 32, 256>}, {pipeline_mode = #tpu.pipeline_mode<synchronous>, transform_indices = @transform_2, window_bounds = array<i64: 32, 288>}, {pipeline_mode = #tpu.pipeline_mode<synchronous>, transform_indices = @transform_3, window_bounds = array<i64: 32, 288>}, {pipeline_mode = #tpu.pipeline_mode<synchronous>, transform_indices = @transform_4, window_bounds = array<i64: 32, 1>}, {pipeline_mode = #tpu.pipeline_mode<synchronous>, transform_indices = @transform_5, window_bounds = array<i64: 32, 1>}, {pipeline_mode = #tpu.pipeline_mode<synchronous>, transform_indices = @transform_6, window_bounds = array<i64: 32, 1>}, {pipeline_mode = #tpu.pipeline_mode<synchronous>, transform_indices = @transform_7, window_bounds = array<i64: 9, 256>}, {transform_indices = @transform_8, window_bounds = array<i64: 1, 32, 256>}]} {
    %c0 = arith.constant 0 : index
    %c0_0 = arith.constant 0 : index
    %0 = vector.load %arg3[%c0, %c0_0] : memref<32x288xbf16, #tpu.memory_space<vmem>>, vector<32x288xbf16>
    %c0_1 = arith.constant 0 : index
    %c0_2 = arith.constant 0 : index
    %c0_3 = arith.constant 0 : index
    %1 = vector.load %arg1[%c0_1, %c0_2, %c0_3] : memref<1x288x256xbf16, #tpu.memory_space<vmem>>, vector<1x288x256xbf16>
    %2 = vector.shape_cast %1 : vector<1x288x256xbf16> to vector<288x256xbf16>
    %cst = arith.constant dense<0.000000e+00> : vector<32x256xf32>
    %3 = tpu.matmul %0, %2, %cst {dimension_numbers = #tpu.dot_dimension_numbers<[1], [0], [0], [1], [0, 0, 1, 1], [], []>} : vector<32x288xbf16>, vector<288x256xbf16>, vector<32x256xf32> -> vector<32x256xf32>
    %c0_4 = arith.constant 0 : index
    %c0_5 = arith.constant 0 : index
    %4 = vector.load %arg5[%c0_4, %c0_5] : memref<32x1xf32, #tpu.memory_space<vmem>>, vector<32x1xf32>
    %5 = vector.broadcast %4 : vector<32x1xf32> to vector<32x256xf32>
    %6 = arith.addf %3, %5 : vector<32x256xf32>
    %cst_6 = arith.constant 0.000000e+00 : f32
    %7 = vector.broadcast %cst_6 : f32 to vector<32x256xf32>
    %8 = arith.cmpf ogt, %6, %7 : vector<32x256xf32>
    %c0_7 = arith.constant 0 : index
    %c0_8 = arith.constant 0 : index
    %9 = vector.load %arg6[%c0_7, %c0_8] : memref<32x1xf32, #tpu.memory_space<vmem>>, vector<32x1xf32>
    %10 = vector.broadcast %9 : vector<32x1xf32> to vector<32x256xf32>
    %11 = arith.mulf %10, %6 : vector<32x256xf32>
    %12 = arith.select %8, %6, %11 : vector<32x256xi1>, vector<32x256xf32>
    %c17_i32 = arith.constant 17 : i32
    %13 = tpu.dynamic_rotate %12 by %c17_i32 dim 1 : vector<32x256xf32>, i32 -> vector<32x256xf32>
    %c0_9 = arith.constant 0 : index
    %c0_10 = arith.constant 0 : index
    %14 = vector.load %arg8[%c0_9, %c0_10] : memref<9x256xf32, #tpu.memory_space<vmem>>, vector<1x256xf32>
    %15 = vector.broadcast %14 : vector<1x256xf32> to vector<32x256xf32>
    %16 = arith.mulf %13, %15 : vector<32x256xf32>
    %17 = arith.truncf %16 : vector<32x256xf32> to vector<32x256xbf16>
    %c16_i32 = arith.constant 16 : i32
    %18 = tpu.dynamic_rotate %12 by %c16_i32 dim 1 : vector<32x256xf32>, i32 -> vector<32x256xf32>
    %c1 = arith.constant 1 : index
    %c0_11 = arith.constant 0 : index
    %19 = vector.load %arg8[%c1, %c0_11] : memref<9x256xf32, #tpu.memory_space<vmem>>, vector<1x256xf32>
    %20 = vector.broadcast %19 : vector<1x256xf32> to vector<32x256xf32>
    %21 = arith.mulf %18, %20 : vector<32x256xf32>
    %22 = arith.truncf %21 : vector<32x256xf32> to vector<32x256xbf16>
    %c15_i32 = arith.constant 15 : i32
    %23 = tpu.dynamic_rotate %12 by %c15_i32 dim 1 : vector<32x256xf32>, i32 -> vector<32x256xf32>
    %c2 = arith.constant 2 : index
    %c0_12 = arith.constant 0 : index
    %24 = vector.load %arg8[%c2, %c0_12] : memref<9x256xf32, #tpu.memory_space<vmem>>, vector<1x256xf32>
    %25 = vector.broadcast %24 : vector<1x256xf32> to vector<32x256xf32>
    %26 = arith.mulf %23, %25 : vector<32x256xf32>
    %27 = arith.truncf %26 : vector<32x256xf32> to vector<32x256xbf16>
    %c1_i32 = arith.constant 1 : i32
    %28 = tpu.dynamic_rotate %12 by %c1_i32 dim 1 : vector<32x256xf32>, i32 -> vector<32x256xf32>
    %c3 = arith.constant 3 : index
    %c0_13 = arith.constant 0 : index
    %29 = vector.load %arg8[%c3, %c0_13] : memref<9x256xf32, #tpu.memory_space<vmem>>, vector<1x256xf32>
    %30 = vector.broadcast %29 : vector<1x256xf32> to vector<32x256xf32>
    %31 = arith.mulf %28, %30 : vector<32x256xf32>
    %32 = arith.truncf %31 : vector<32x256xf32> to vector<32x256xbf16>
    %c4 = arith.constant 4 : index
    %c0_14 = arith.constant 0 : index
    %33 = vector.load %arg8[%c4, %c0_14] : memref<9x256xf32, #tpu.memory_space<vmem>>, vector<1x256xf32>
    %34 = vector.broadcast %33 : vector<1x256xf32> to vector<32x256xf32>
    %35 = arith.mulf %12, %34 : vector<32x256xf32>
    %36 = arith.truncf %35 : vector<32x256xf32> to vector<32x256xbf16>
    %c255_i32 = arith.constant 255 : i32
    %37 = tpu.dynamic_rotate %12 by %c255_i32 dim 1 : vector<32x256xf32>, i32 -> vector<32x256xf32>
    %c5 = arith.constant 5 : index
    %c0_15 = arith.constant 0 : index
    %38 = vector.load %arg8[%c5, %c0_15] : memref<9x256xf32, #tpu.memory_space<vmem>>, vector<1x256xf32>
    %39 = vector.broadcast %38 : vector<1x256xf32> to vector<32x256xf32>
    %40 = arith.mulf %37, %39 : vector<32x256xf32>
    %41 = arith.truncf %40 : vector<32x256xf32> to vector<32x256xbf16>
    %c241_i32 = arith.constant 241 : i32
    %42 = tpu.dynamic_rotate %12 by %c241_i32 dim 1 : vector<32x256xf32>, i32 -> vector<32x256xf32>
    %c6 = arith.constant 6 : index
    %c0_16 = arith.constant 0 : index
    %43 = vector.load %arg8[%c6, %c0_16] : memref<9x256xf32, #tpu.memory_space<vmem>>, vector<1x256xf32>
    %44 = vector.broadcast %43 : vector<1x256xf32> to vector<32x256xf32>
    %45 = arith.mulf %42, %44 : vector<32x256xf32>
    %46 = arith.truncf %45 : vector<32x256xf32> to vector<32x256xbf16>
    %c240_i32 = arith.constant 240 : i32
    %47 = tpu.dynamic_rotate %12 by %c240_i32 dim 1 : vector<32x256xf32>, i32 -> vector<32x256xf32>
    %c7 = arith.constant 7 : index
    %c0_17 = arith.constant 0 : index
    %48 = vector.load %arg8[%c7, %c0_17] : memref<9x256xf32, #tpu.memory_space<vmem>>, vector<1x256xf32>
    %49 = vector.broadcast %48 : vector<1x256xf32> to vector<32x256xf32>
    %50 = arith.mulf %47, %49 : vector<32x256xf32>
    %51 = arith.truncf %50 : vector<32x256xf32> to vector<32x256xbf16>
    %c239_i32 = arith.constant 239 : i32
    %52 = tpu.dynamic_rotate %12 by %c239_i32 dim 1 : vector<32x256xf32>, i32 -> vector<32x256xf32>
    %c8 = arith.constant 8 : index
    %c0_18 = arith.constant 0 : index
    %53 = vector.load %arg8[%c8, %c0_18] : memref<9x256xf32, #tpu.memory_space<vmem>>, vector<1x256xf32>
    %54 = vector.broadcast %53 : vector<1x256xf32> to vector<32x256xf32>
    %55 = arith.mulf %52, %54 : vector<32x256xf32>
    %56 = arith.truncf %55 : vector<32x256xf32> to vector<32x256xbf16>
    %57 = tpu.concatenate %17, %22, %27, %32, %36, %41, %46, %51, %56 in 0 : vector<32x256xbf16>, vector<32x256xbf16>, vector<32x256xbf16>, vector<32x256xbf16>, vector<32x256xbf16>, vector<32x256xbf16>, vector<32x256xbf16>, vector<32x256xbf16>, vector<32x256xbf16> -> vector<288x256xbf16>
    %c0_19 = arith.constant 0 : index
    %c0_20 = arith.constant 0 : index
    %58 = vector.load %arg4[%c0_19, %c0_20] : memref<32x288xbf16, #tpu.memory_space<vmem>>, vector<32x288xbf16>
    %cst_21 = arith.constant dense<0.000000e+00> : vector<32x256xf32>
    %59 = tpu.matmul %58, %57, %cst_21 {dimension_numbers = #tpu.dot_dimension_numbers<[1], [0], [0], [1], [0, 0, 1, 1], [], []>} : vector<32x288xbf16>, vector<288x256xbf16>, vector<32x256xf32> -> vector<32x256xf32>
    %c0_22 = arith.constant 0 : index
    %c0_23 = arith.constant 0 : index
    %60 = vector.load %arg7[%c0_22, %c0_23] : memref<32x1xf32, #tpu.memory_space<vmem>>, vector<32x1xf32>
    %61 = vector.broadcast %60 : vector<32x1xf32> to vector<32x256xf32>
    %62 = arith.addf %59, %61 : vector<32x256xf32>
    %c0_24 = arith.constant 0 : index
    %c0_25 = arith.constant 0 : index
    %c0_26 = arith.constant 0 : index
    %63 = vector.load %arg2[%c0_24, %c0_25, %c0_26] : memref<1x32x256xf32, #tpu.memory_space<vmem>>, vector<1x32x256xf32>
    %64 = vector.shape_cast %63 : vector<1x32x256xf32> to vector<32x256xf32>
    %65 = arith.addf %62, %64 : vector<32x256xf32>
    %c0_27 = arith.constant 0 : index
    %c0_28 = arith.constant 0 : index
    %c0_29 = arith.constant 0 : index
    %66 = vector.load %arg9[%c0_27, %c0_28, %c0_29] : memref<1x32x256xf32, #tpu.memory_space<vmem>>, vector<1x32x256xf32>
    %67 = vector.shape_cast %66 : vector<1x32x256xf32> to vector<32x256xf32>
    %68 = vector.shape_cast %65 : vector<32x256xf32> to vector<1x32x256xf32>
    tpu.vector_store %arg9[%c0_27, %c0_28, %c0_29], %68 {strides = array<i32>} : memref<1x32x256xf32, #tpu.memory_space<vmem>>, vector<1x32x256xf32>,
    return
  }
  func.func @transform_0(%arg0: i32) -> (i32, i32, i32) {
    %c0_i32 = arith.constant 0 : i32
    %c0_i32_0 = arith.constant 0 : i32
    %c0_i32_1 = arith.constant 0 : i32
    return %arg0, %c0_i32, %c0_i32_0 : i32, i32, i32
  }
  func.func @transform_1(%arg0: i32) -> (i32, i32, i32) {
    %c0_i32 = arith.constant 0 : i32
    %c0_i32_0 = arith.constant 0 : i32
    %c0_i32_1 = arith.constant 0 : i32
    return %arg0, %c0_i32, %c0_i32_0 : i32, i32, i32
  }
  func.func @transform_2(%arg0: i32) -> (i32, i32) {
    %c0_i32 = arith.constant 0 : i32
    %c0_i32_0 = arith.constant 0 : i32
    %c0_i32_1 = arith.constant 0 : i32
    return %c0_i32, %c0_i32_0 : i32, i32
  }
  func.func @transform_3(%arg0: i32) -> (i32, i32) {
    %c0_i32 = arith.constant 0 : i32
    %c0_i32_0 = arith.constant 0 : i32
    %c0_i32_1 = arith.constant 0 : i32
    return %c0_i32, %c0_i32_0 : i32, i32
  }
  func.func @transform_4(%arg0: i32) -> (i32, i32) {
    %c0_i32 = arith.constant 0 : i32
    %c0_i32_0 = arith.constant 0 : i32
    %c0_i32_1 = arith.constant 0 : i32
    return %c0_i32, %c0_i32_0 : i32, i32
  }
  func.func @transform_5(%arg0: i32) -> (i32, i32) {
    %c0_i32 = arith.constant 0 : i32
    %c0_i32_0 = arith.constant 0 : i32
    %c0_i32_1 = arith.constant 0 : i32
    return %c0_i32, %c0_i32_0 : i32, i32
  }
  func.func @transform_6(%arg0: i32) -> (i32, i32) {
    %c0_i32 = arith.constant 0 : i32
    %c0_i32_0 = arith.constant 0 : i32
    %c0_i32_1 = arith.constant 0 : i32
    return %c0_i32, %c0_i32_0 : i32, i32
  }
  func.func @transform_7(%arg0: i32) -> (i32, i32) {
    %c0_i32 = arith.constant 0 : i32
    %c0_i32_0 = arith.constant 0 : i32
    %c0_i32_1 = arith.constant 0 : i32
    return %c0_i32, %c0_i32_0 : i32, i32
  }
  func.func @transform_8(%arg0: i32) -> (i32, i32, i32) {
    %c0_i32 = arith.constant 0 : i32
    %c0_i32_0 = arith.constant 0 : i32
    %c0_i32_1 = arith.constant 0 : i32
    return %arg0, %c0_i32, %c0_i32_0 : i32, i32, i32
  }
}

</mosaic_0001>

<llo_original>
// kernel: tpu_custom_call.1
$region0: #{tpu_custom_call.1}
  #allocation0 [shape = 'u32[]', space=smem, size = 0x4, offset = 0x4, fixed_abs, tag = 'smem constant byte address 0x4 - core index']
  #allocation1 [shape = 'u32[144,128]{1,0:T(1,128)}', space=vmem, size = 0x12000, scoped, tag = 'internal scratch']
  %s0 = inlined_call_operand.hbm [shape: bf16[2,288,256], index: 0, kind: input, shape index: {}]
  %s1 = inlined_call_operand.hbm [shape: f32[2,32,256], index: 1, kind: input, shape index: {}]
  %s2 = inlined_call_operand.vmem [shape: bf16[32,288], index: 2, kind: input, shape index: {}]
  %s3 = inlined_call_operand.vmem [shape: bf16[32,288], index: 3, kind: input, shape index: {}]
  %s4 = inlined_call_operand.vmem [shape: f32[32,1], index: 4, kind: input, shape index: {}]
  %s5 = inlined_call_operand.vmem [shape: f32[32,1], index: 5, kind: input, shape index: {}]
  %s6 = inlined_call_operand.vmem [shape: f32[32,1], index: 6, kind: input, shape index: {}]
  %s7 = inlined_call_operand.hbm [shape: f32[9,256], index: 7, kind: input, shape index: {}]
  %s8 = inlined_call_operand.hbm [shape: f32[2,32,256], index: 8, kind: output, shape index: {}]
  %s9 = sld [smem:[#allocation0]]
  $region77: #{tpu_custom_call.1} parent=0
    _
  %s11 = ssub.s32 1, %s9
  %s12 = scalar_select 0, %s11, %s9
  $region1: #{tpu_custom_call.1} parent=0
    #allocation2 [shape = 'u8[294912]{0}', space=vmem, size = 0x48000, scoped, tag = 'input window, operand 0']
    #allocation3 [shape = 's32[2]{0}', space=sflag, size = 0x8, scoped, tag = 'scoped memory for tpu_custom_call.1']
    #allocation4 [shape = 's32[2]{0}', space=sflag, size = 0x8, scoped, tag = 'scoped memory for tpu_custom_call.1']
    #allocation5 [shape = 'u8[65536]{0}', space=vmem, size = 0x10000, scoped, tag = 'input window, operand 1']
    #allocation6 [shape = 's32[2]{0}', space=sflag, size = 0x8, scoped, tag = 'scoped memory for tpu_custom_call.1']
    #allocation7 [shape = 'u8[16384]{0}', space=vmem, size = 0x4000, scoped, tag = 'input window, operand 7, single buffered']
    #allocation8 [shape = 'u8[65536]{0}', space=vmem, size = 0x10000, scoped, tag = 'output window, operand 0']
    %13 = vsyncpa [#allocation3], 0
    %s14 = scalar_lea.sflag [#allocation3], 1
    %15 = vsyncpa %s14, 0
    %16 = vsyncpa [#allocation6], 0
    %s17 = scalar_lea.sflag [#allocation6], 1
    %18 = vsyncpa %s17, 0
    %19 = vsyncpa [#allocation4], 0
    %s20 = scalar_lea.sflag [#allocation4], 1
    %21 = vsyncpa %s20, 0
    loop: start=0, step=1, limit=4
    $region2: #{tpu_custom_call.1} parent=1 // loop_pre_header
      _
    $region3: #{tpu_custom_call.1} parent=1 // loop_header
      %s23 = sphi 0, %s27
      %p24 = scmp.ge.s32.totalorder %s23, 4
      %s33 = sphi 0, %s35
      %s36 = sphi 0, %s33
      %s37 = sphi 0, %s36
      %s53 = sphi 0, %s37
      %s59 = sphi 0, %s61
      %s62 = sphi 0, %s59
      %s63 = sphi 0, %s62
      %s79 = sphi 0, %s63
      %s83 = sphi 0, %s83
      %s85 = sphi 0, %s83
      %s86 = sphi 0, %s85
      %s100 = sphi 0, %s86
      %s104 = sphi 0, %s104
      %s106 = sphi 0, %s104
      %s107 = sphi 0, %s106
      %s121 = sphi 0, %s107
      %s125 = sphi 0, %s125
      %s127 = sphi 0, %s125
      %s128 = sphi 0, %s127
      %s142 = sphi 0, %s128
      %s146 = sphi 0, %s146
      %s148 = sphi 0, %s146
      %s149 = sphi 0, %s148
      %s163 = sphi 0, %s149
      %s167 = sphi 0, %s167
      %s169 = sphi 0, %s167
      %s170 = sphi 0, %s169
      %s184 = sphi 0, %s170
      %s188 = sphi 0, %s188
      %s190 = sphi 0, %s188
      %s191 = sphi 0, %s190
      %s205 = sphi 0, %s191
      %s211 = sphi 0, %s213
      %s214 = sphi 0, %s211
      %s215 = sphi 0, %s214
      %s231 = sphi 0, %s215
    $region4: #{tpu_custom_call.1} parent=1 // loop_header_branch
      %26 = sbr.rel (%p24) target = $region8
    $region5: #{tpu_custom_call.1} parent=1 // loop_body
      %s28 = ssub.s32 %s23, 1
      %s29 = ssub.s32 %s23, 2
      %s30 = sadd.s32 %s23, 1
      %s31 = ssub.s32 %s23, %s30
      %p32 = scmp.eq.s32.totalorder %s31, 0
      %s34 = sadd.s32 %s33, 1
      %s35 = scalar_select %p32, %s33, %s34
      %p38 = pneg %p32
      %p39 = scmp.eq.s32.totalorder %s23, 1
      %p40 = por %p38, %p39
      %p41 = scmp.ne.s32.totalorder %s33, %s36
      %p42 = scmp.eq.s32.totalorder %s23, 0
      %p43 = por %p41, %p42
      %p44 = scmp.ne.s32.totalorder %s33, %s36
      %p45 = scmp.eq.s32.totalorder %s28, 1
      %p46 = por %p44, %p45
      %p47 = scmp.ne.s32.totalorder %s36, %s37
      %p48 = scmp.eq.s32.totalorder %s28, 0
      %p49 = por %p47, %p48
      %p50 = scmp.ne.s32.totalorder %s36, %s37
      %p51 = scmp.eq.s32.totalorder %s29, 1
      %p52 = por %p50, %p51
      %p54 = scmp.ne.s32.totalorder %s37, %s53
      %p55 = scmp.eq.s32.totalorder %s29, 0
      %p56 = por %p54, %p55
      %s57 = ssub.s32 %s23, %s30
      %p58 = scmp.eq.s32.totalorder %s57, 0
      %s60 = sadd.s32 %s59, 1
      %s61 = scalar_select %p58, %s59, %s60
      %p64 = pneg %p58
      %p65 = scmp.eq.s32.totalorder %s23, 1
      %p66 = por %p64, %p65
      %p67 = scmp.ne.s32.totalorder %s59, %s62
      %p68 = scmp.eq.s32.totalorder %s23, 0
      %p69 = por %p67, %p68
      %p70 = scmp.ne.s32.totalorder %s59, %s62
      %p71 = scmp.eq.s32.totalorder %s28, 1
      %p72 = por %p70, %p71
      %p73 = scmp.ne.s32.totalorder %s62, %s63
      %p74 = scmp.eq.s32.totalorder %s28, 0
      %p75 = por %p73, %p74
      %p76 = scmp.ne.s32.totalorder %s62, %s63
      %p77 = scmp.eq.s32.totalorder %s29, 1
      %p78 = por %p76, %p77
      %p80 = scmp.ne.s32.totalorder %s63, %s79
      %p81 = scmp.eq.s32.totalorder %s29, 0
      %p82 = por %p80, %p81
      %s84 = sadd.s32 %s83, 1
      %p87 = scmp.eq.s32.totalorder %s23, 1
      %p88 = scmp.ne.s32.totalorder %s83, %s85
      %p89 = scmp.eq.s32.totalorder %s23, 0
      %p90 = por %p88, %p89
      %p91 = scmp.ne.s32.totalorder %s83, %s85
      %p92 = scmp.eq.s32.totalorder %s28, 1
      %p93 = por %p91, %p92
      %p94 = scmp.ne.s32.totalorder %s85, %s86
      %p95 = scmp.eq.s32.totalorder %s28, 0
      %p96 = por %p94, %p95
      %p97 = scmp.ne.s32.totalorder %s85, %s86
      %p98 = scmp.eq.s32.totalorder %s29, 1
      %p99 = por %p97, %p98
      %p101 = scmp.ne.s32.totalorder %s86, %s100
      %p102 = scmp.eq.s32.totalorder %s29, 0
      %p103 = por %p101, %p102
      %s105 = sadd.s32 %s104, 1
      %p108 = scmp.eq.s32.totalorder %s23, 1
      %p109 = scmp.ne.s32.totalorder %s104, %s106
      %p110 = scmp.eq.s32.totalorder %s23, 0
      %p111 = por %p109, %p110
      %p112 = scmp.ne.s32.totalorder %s104, %s106
      %p113 = scmp.eq.s32.totalorder %s28, 1
      %p114 = por %p112, %p113
      %p115 = scmp.ne.s32.totalorder %s106, %s107
      %p116 = scmp.eq.s32.totalorder %s28, 0
      %p117 = por %p115, %p116
      %p118 = scmp.ne.s32.totalorder %s106, %s107
      %p119 = scmp.eq.s32.totalorder %s29, 1
      %p120 = por %p118, %p119
      %p122 = scmp.ne.s32.totalorder %s107, %s121
      %p123 = scmp.eq.s32.totalorder %s29, 0
      %p124 = por %p122, %p123
      %s126 = sadd.s32 %s125, 1
      %p129 = scmp.eq.s32.totalorder %s23, 1
      %p130 = scmp.ne.s32.totalorder %s125, %s127
      %p131 = scmp.eq.s32.totalorder %s23, 0
      %p132 = por %p130, %p131
      %p133 = scmp.ne.s32.totalorder %s125, %s127
      %p134 = scmp.eq.s32.totalorder %s28, 1
      %p135 = por %p133, %p134
      %p136 = scmp.ne.s32.totalorder %s127, %s128
      %p137 = scmp.eq.s32.totalorder %s28, 0
      %p138 = por %p136, %p137
      %p139 = scmp.ne.s32.totalorder %s127, %s128
      %p140 = scmp.eq.s32.totalorder %s29, 1
      %p141 = por %p139, %p140
      %p143 = scmp.ne.s32.totalorder %s128, %s142
      %p144 = scmp.eq.s32.totalorder %s29, 0
      %p145 = por %p143, %p144
      %s147 = sadd.s32 %s146, 1
      %p150 = scmp.eq.s32.totalorder %s23, 1
      %p151 = scmp.ne.s32.totalorder %s146, %s148
      %p152 = scmp.eq.s32.totalorder %s23, 0
      %p153 = por %p151, %p152
      %p154 = scmp.ne.s32.totalorder %s146, %s148
      %p155 = scmp.eq.s32.totalorder %s28, 1
      %p156 = por %p154, %p155
      %p157 = scmp.ne.s32.totalorder %s148, %s149
      %p158 = scmp.eq.s32.totalorder %s28, 0
      %p159 = por %p157, %p158
      %p160 = scmp.ne.s32.totalorder %s148, %s149
      %p161 = scmp.eq.s32.totalorder %s29, 1
      %p162 = por %p160, %p161
      %p164 = scmp.ne.s32.totalorder %s149, %s163
      %p165 = scmp.eq.s32.totalorder %s29, 0
      %p166 = por %p164, %p165
      %s168 = sadd.s32 %s167, 1
      %p171 = scmp.eq.s32.totalorder %s23, 1
      %p172 = scmp.ne.s32.totalorder %s167, %s169
      %p173 = scmp.eq.s32.totalorder %s23, 0
      %p174 = por %p172, %p173
      %p175 = scmp.ne.s32.totalorder %s167, %s169
      %p176 = scmp.eq.s32.totalorder %s28, 1
      %p177 = por %p175, %p176
      %p178 = scmp.ne.s32.totalorder %s169, %s170
      %p179 = scmp.eq.s32.totalorder %s28, 0
      %p180 = por %p178, %p179
      %p181 = scmp.ne.s32.totalorder %s169, %s170
      %p182 = scmp.eq.s32.totalorder %s29, 1
      %p183 = por %p181, %p182
      %p185 = scmp.ne.s32.totalorder %s170, %s184
      %p186 = scmp.eq.s32.totalorder %s29, 0
      %p187 = por %p185, %p186
      %s189 = sadd.s32 %s188, 1
      %p192 = scmp.eq.s32.totalorder %s23, 1
      %p193 = scmp.ne.s32.totalorder %s188, %s190
      %p194 = scmp.eq.s32.totalorder %s23, 0
      %p195 = por %p193, %p194
      %p196 = scmp.ne.s32.totalorder %s188, %s190
      %p197 = scmp.eq.s32.totalorder %s28, 1
      %p198 = por %p196, %p197
      %p199 = scmp.ne.s32.totalorder %s190, %s191
      %p200 = scmp.eq.s32.totalorder %s28, 0
      %p201 = por %p199, %p200
      %p202 = scmp.ne.s32.totalorder %s190, %s191
      %p203 = scmp.eq.s32.totalorder %s29, 1
      %p204 = por %p202, %p203
      %p206 = scmp.ne.s32.totalorder %s191, %s205
      %p207 = scmp.eq.s32.totalorder %s29, 0
      %p208 = por %p206, %p207
      %s209 = ssub.s32 %s23, %s30
      %p210 = scmp.eq.s32.totalorder %s209, 0
      %s212 = sadd.s32 %s211, 1
      %s213 = scalar_select %p210, %s211, %s212
      %p216 = pneg %p210
      %p217 = scmp.eq.s32.totalorder %s23, 1
      %p218 = por %p216, %p217
      %p219 = scmp.ne.s32.totalorder %s211, %s214
      %p220 = scmp.eq.s32.totalorder %s23, 0
      %p221 = por %p219, %p220
      %p222 = scmp.ne.s32.totalorder %s211, %s214
      %p223 = scmp.eq.s32.totalorder %s28, 1
      %p224 = por %p222, %p223
      %p225 = scmp.ne.s32.totalorder %s214, %s215
      %p226 = scmp.eq.s32.totalorder %s28, 0
      %p227 = por %p225, %p226
      %p228 = scmp.ne.s32.totalorder %s214, %s215
      %p229 = scmp.eq.s32.totalorder %s29, 1
      %p230 = por %p228, %p229
      %p232 = scmp.ne.s32.totalorder %s215, %s231
      %p233 = scmp.eq.s32.totalorder %s29, 0
      %p234 = por %p232, %p233
      %p235 = scmp.le.s32.totalorder 1, %s23
      %p236 = scmp.lt.s32.totalorder %s23, 3
      %p237 = pnand %p235, %p236
      %p238 = pneg %p237
      // Predicated region
      $region9: #{tpu_custom_call.1} parent=5 // pred_check
        _
      $region10: #{tpu_custom_call.1} parent=5 // pred_check_branch
        %240 = sbr.rel (%p237) target = $region12
      $region11: #{tpu_custom_call.1} parent=5 // pred_region
        %s241 = ssub.s32 %s23, 1
        // Predicated region
        $region13: #{tpu_custom_call.1} parent=11 // pred_check
          %p242 = pneg %p96
        $region14: #{tpu_custom_call.1} parent=11 // pred_check_branch
          %244 = sbr.rel (%p242) target = $region16
        $region15: #{tpu_custom_call.1} parent=11 // pred_region
          _
        $region16: #{tpu_custom_call.1} parent=11 // pred_fallthru
          _
        // Predicated region
        $region17: #{tpu_custom_call.1} parent=11 // pred_check
          %p245 = pneg %p117
        $region18: #{tpu_custom_call.1} parent=11 // pred_check_branch
          %247 = sbr.rel (%p245) target = $region20
        $region19: #{tpu_custom_call.1} parent=11 // pred_region
          _
        $region20: #{tpu_custom_call.1} parent=11 // pred_fallthru
          _
        // Predicated region
        $region21: #{tpu_custom_call.1} parent=11 // pred_check
          %p248 = pneg %p138
        $region22: #{tpu_custom_call.1} parent=11 // pred_check_branch
          %250 = sbr.rel (%p248) target = $region24
        $region23: #{tpu_custom_call.1} parent=11 // pred_region
          _
        $region24: #{tpu_custom_call.1} parent=11 // pred_fallthru
          _
        // Predicated region
        $region25: #{tpu_custom_call.1} parent=11 // pred_check
          %p251 = pneg %p159
        $region26: #{tpu_custom_call.1} parent=11 // pred_check_branch
          %253 = sbr.rel (%p251) target = $region28
        $region27: #{tpu_custom_call.1} parent=11 // pred_region
          _
        $region28: #{tpu_custom_call.1} parent=11 // pred_fallthru
          _
        // Predicated region
        $region29: #{tpu_custom_call.1} parent=11 // pred_check
          %p254 = pneg %p180
        $region30: #{tpu_custom_call.1} parent=11 // pred_check_branch
          %256 = sbr.rel (%p254) target = $region32
        $region31: #{tpu_custom_call.1} parent=11 // pred_region
          _
        $region32: #{tpu_custom_call.1} parent=11 // pred_fallthru
          _
        // Predicated region
        $region33: #{tpu_custom_call.1} parent=11 // pred_check
          %p257 = pneg %p201
        $region34: #{tpu_custom_call.1} parent=11 // pred_check_branch
          %259 = sbr.rel (%p257) target = $region36
        $region35: #{tpu_custom_call.1} parent=11 // pred_region
          %s261 = ssub.s32 512, 512
          %262 = vsyncadd [#allocation6], %s261
          %s263 = sshll.u32 [#allocation7], 4
          %s264 = int_to_ptr.vmem [resolvable:$true] %s263
          %269 = dma.hbm_to_vmem [thread:$0]  %s7, 512, %s264, [#allocation6], 256, 256, 16
        $region36: #{tpu_custom_call.1} parent=11 // pred_fallthru
          _
      $region12: #{tpu_custom_call.1} parent=5 // pred_fallthru
        _
      %p270 = scmp.lt.s32.totalorder %s23, 2
      // Predicated region
      $region37: #{tpu_custom_call.1} parent=5 // pred_check
        %p271 = pneg %p270
      $region38: #{tpu_custom_call.1} parent=5 // pred_check_branch
        %273 = sbr.rel (%p271) target = $region40
      $region39: #{tpu_custom_call.1} parent=5 // pred_region
        // Predicated region
        $region41: #{tpu_custom_call.1} parent=39 // pred_check
          %p274 = pneg %p43
        $region42: #{tpu_custom_call.1} parent=39 // pred_check_branch
          %276 = sbr.rel (%p274) target = $region44
        $region43: #{tpu_custom_call.1} parent=39 // pred_region
          %s277 = sand.u32 %s33, 1
          %s278 = scalar_lea.sflag [#allocation3], %s277
          %s279 = sand.u32 %s33, 1
          %s280 = smul.addr %s279, 288
          %s281 = scalar_lea.vmem [#allocation2], %s280
          %s283 = ssub.s32 4608, 4608
          %284 = vsyncadd %s278, %s283
          %s285 = smul.addr %s23, 72
          %s286 = smul.addr %s285, 64
          %s287 = scalar_lea.hbm %s0, %s286
          %s288 = sshll.u32 %s281, 4
          %s289 = int_to_ptr.vmem [resolvable:$true] %s288
          %294 = dma.hbm_to_vmem [thread:$0]  %s287, 4608, %s289, %s278, 128, 128, 8
        $region44: #{tpu_custom_call.1} parent=39 // pred_fallthru
          _
        // Predicated region
        $region45: #{tpu_custom_call.1} parent=39 // pred_check
          %p295 = pneg %p69
        $region46: #{tpu_custom_call.1} parent=39 // pred_check_branch
          %297 = sbr.rel (%p295) target = $region48
        $region47: #{tpu_custom_call.1} parent=39 // pred_region
          %s298 = sand.u32 %s23, 1
          %s299 = scalar_lea.sflag [#allocation6], %s298
          %s300 = sand.u32 %s59, 1
          %s301 = smul.addr %s300, 64
          %s302 = scalar_lea.vmem [#allocation5], %s301
          %s304 = ssub.s32 1024, 1024
          %305 = vsyncadd %s299, %s304
          %s306 = smul.addr %s23, 8
          %s307 = smul.addr %s306, 128
          %s308 = scalar_lea.hbm %s1, %s307
          %s309 = sshll.u32 %s302, 4
          %s310 = int_to_ptr.vmem [resolvable:$true] %s309
          %315 = dma.hbm_to_vmem [thread:$0]  %s308, 1024, %s310, %s299, 256, 256, 16
        $region48: #{tpu_custom_call.1} parent=39 // pred_fallthru
          _
      $region40: #{tpu_custom_call.1} parent=5 // pred_fallthru
        _
      %p316 = scmp.le.s32.totalorder 1, %s23
      %p317 = scmp.lt.s32.totalorder %s23, 3
      %p318 = pnand %p316, %p317
      %p319 = pneg %p318
      // Predicated region
      $region49: #{tpu_custom_call.1} parent=5 // pred_check
        _
      $region50: #{tpu_custom_call.1} parent=5 // pred_check_branch
        %321 = sbr.rel (%p318) target = $region52
      $region51: #{tpu_custom_call.1} parent=5 // pred_region
        %s322 = ssub.s32 %s23, 1
        %s323 = sand.u32 %s36, 1
        %s324 = scalar_lea.sflag [#allocation3], %s323
        %s325 = sand.u32 %s36, 1
        %s326 = smul.addr %s325, 288
        %s327 = scalar_lea.vmem [#allocation2], %s326
        // Predicated region
        $region53: #{tpu_custom_call.1} parent=51 // pred_check
          %p328 = pneg %p49
        $region54: #{tpu_custom_call.1} parent=51 // pred_check_branch
          %330 = sbr.rel (%p328) target = $region56
        $region55: #{tpu_custom_call.1} parent=51 // pred_region
          %331 = dma.done %s324, 4608
        $region56: #{tpu_custom_call.1} parent=51 // pred_fallthru
          _
        %s332 = sand.u32 %s28, 1
        %s333 = scalar_lea.sflag [#allocation6], %s332
        %s334 = sand.u32 %s62, 1
        %s335 = smul.addr %s334, 64
        %s336 = scalar_lea.vmem [#allocation5], %s335
        // Predicated region
        $region57: #{tpu_custom_call.1} parent=51 // pred_check
          %p337 = pneg %p75
        $region58: #{tpu_custom_call.1} parent=51 // pred_check_branch
          %339 = sbr.rel (%p337) target = $region60
        $region59: #{tpu_custom_call.1} parent=51 // pred_region
          %340 = dma.done %s333, 1024
        $region60: #{tpu_custom_call.1} parent=51 // pred_fallthru
          _
        // Predicated region
        $region61: #{tpu_custom_call.1} parent=51 // pred_check
          %p341 = pneg %p201
        $region62: #{tpu_custom_call.1} parent=51 // pred_check_branch
          %343 = sbr.rel (%p341) target = $region64
        $region63: #{tpu_custom_call.1} parent=51 // pred_region
          %344 = dma.done [#allocation6], 512
        $region64: #{tpu_custom_call.1} parent=51 // pred_fallthru
          _
        %s345 = sand.u32 %s36, 1
        %s346 = scalar_lea.sflag [#allocation3], %s345
        %s347 = sand.u32 %s36, 1
        %s348 = smul.addr %s347, 288
        %s349 = scalar_lea.vmem [#allocation2], %s348
        %p350 = pneg %p49
        %p351 = pneg %p46
        %s352 = sand.u32 %s28, 1
        %s353 = scalar_lea.sflag [#allocation6], %s352
        %s354 = sand.u32 %s62, 1
        %s355 = smul.addr %s354, 64
        %s356 = scalar_lea.vmem [#allocation5], %s355
        %p357 = pneg %p75
        %p358 = pneg %p72
        %p359 = pneg %p96
        %p360 = pneg %p93
        %p361 = pneg %p117
        %p362 = pneg %p114
        %p363 = pneg %p138
        %p364 = pneg %p135
        %p365 = pneg %p159
        %p366 = pneg %p156
        %p367 = pneg %p180
        %p368 = pneg %p177
        %p369 = pneg %p201
        %p370 = pneg %p198
        %p371 = pneg %p227
        %p372 = pneg %p224
        %s373 = sand.u32 %s214, 1
        %s374 = scalar_lea.sflag [#allocation4], %s373
        %s375 = sand.u32 %s214, 1
        %s376 = smul.addr %s375, 64
        %s377 = scalar_lea.vmem [#allocation8], %s376
        %v379 = vld [vmem:[%s2] sm:$0xff]
        %v380 = vld [vmem:[%s2 + $0x8] sm:$0xf]
        %v381 = vld [vmem:[%s2 + $0xc] sm:$0xff]
        %v382 = vld [vmem:[%s2 + $0x14] sm:$0xf]
        %v383 = vld [vmem:[%s2 + $0x18] sm:$0xff]
        %v384 = vld [vmem:[%s2 + $0x20] sm:$0xf]
        %v385 = vld [vmem:[%s2 + $0x24] sm:$0xff]
        %v386 = vld [vmem:[%s2 + $0x2c] sm:$0xf]
        %v387 = vld [vmem:[%s327] sm:$0xff]
        %v388 = vld [vmem:[%s327 + $0x8] sm:$0xff]
        %v389 = vld [vmem:[%s327 + $0x10] sm:$0xff]
        %v390 = vld [vmem:[%s327 + $0x18] sm:$0xff]
        %v391 = vld [vmem:[%s327 + $0x20] sm:$0xff]
        %v392 = vld [vmem:[%s327 + $0x28] sm:$0xff]
        %v393 = vld [vmem:[%s327 + $0x30] sm:$0xff]
        %v394 = vld [vmem:[%s327 + $0x38] sm:$0xff]
        %v395 = vld [vmem:[%s327 + $0x40] sm:$0xff]
        %v396 = vld [vmem:[%s327 + $0x48] sm:$0xff]
        %v397 = vld [vmem:[%s327 + $0x50] sm:$0xff]
        %v398 = vld [vmem:[%s327 + $0x58] sm:$0xff]
        %v399 = vld [vmem:[%s327 + $0x60] sm:$0xff]
        %v400 = vld [vmem:[%s327 + $0x68] sm:$0xff]
        %v401 = vld [vmem:[%s327 + $0x70] sm:$0xff]
        %v402 = vld [vmem:[%s327 + $0x78] sm:$0xff]
        %v403 = vld [vmem:[%s327 + $0x80] sm:$0xff]
        %v404 = vld [vmem:[%s327 + $0x88] sm:$0xff]
        %v405 = vld [vmem:[%s327 + $0x90] sm:$0xff]
        %v406 = vld [vmem:[%s327 + $0x98] sm:$0xff]
        %v407 = vld [vmem:[%s327 + $0xa0] sm:$0xff]
        %v408 = vld [vmem:[%s327 + $0xa8] sm:$0xff]
        %v409 = vld [vmem:[%s327 + $0xb0] sm:$0xff]
        %v410 = vld [vmem:[%s327 + $0xb8] sm:$0xff]
        %v411 = vld [vmem:[%s327 + $0xc0] sm:$0xff]
        %v412 = vld [vmem:[%s327 + $0xc8] sm:$0xff]
        %v413 = vld [vmem:[%s327 + $0xd0] sm:$0xff]
        %v414 = vld [vmem:[%s327 + $0xd8] sm:$0xff]
        %v415 = vld [vmem:[%s327 + $0xe0] sm:$0xff]
        %v416 = vld [vmem:[%s327 + $0xe8] sm:$0xff]
        %v417 = vld [vmem:[%s327 + $0xf0] sm:$0xff]
        %v418 = vld [vmem:[%s327 + $0xf8] sm:$0xff]
        %v419 = vld [vmem:[%s327 + $0x100] sm:$0xff]
        %v420 = vld [vmem:[%s327 + $0x108] sm:$0xff]
        %v421 = vld [vmem:[%s327 + $0x110] sm:$0xff]
        %v422 = vld [vmem:[%s327 + $0x118] sm:$0xff]
        %v423 = vld [vmem:[%s4] sm:$0xff]
        %v424 = vld [vmem:[%s4 + $0x8] sm:$0xff]
        %v425 = vld [vmem:[%s4 + $0x10] sm:$0xff]
        %v426 = vld [vmem:[%s4 + $0x18] sm:$0xff]
        %428 = vset.pattern.permute.xlu0 0
        %429 = vperm.xlu0 %428, %v423
        %v430 = vpop.permute.xlu0 %429
        %433 = vset.pattern.permute.xlu0 0
        %434 = vperm.xlu0 %433, %v424
        %v435 = vpop.permute.xlu0 %434
        %438 = vset.pattern.permute.xlu0 0
        %439 = vperm.xlu0 %438, %v425
        %v440 = vpop.permute.xlu0 %439
        %443 = vset.pattern.permute.xlu0 0
        %444 = vperm.xlu0 %443, %v426
        %v445 = vpop.permute.xlu0 %444
        %v455 = vunpack.c.l.b16 %v379
        %v456 = vunpack.c.h.b16 %v379
        %v457 = vunpack.c.l.b16 %v380
        %v458 = vunpack.c.l.b16 %v381
        %v459 = vunpack.c.h.b16 %v381
        %v460 = vunpack.c.l.b16 %v382
        %v461 = vunpack.c.l.b16 %v383
        %v462 = vunpack.c.h.b16 %v383
        %v463 = vunpack.c.l.b16 %v384
        %v464 = vunpack.c.l.b16 %v385
        %v465 = vunpack.c.h.b16 %v385
        %v466 = vunpack.c.l.b16 %v386
        %v467 = vpack.c.b16 %v458, %v455
        %v468 = vpack.c.b16 %v459, %v456
        %v469 = vpack.c.b16 %v460, %v457
        %v470 = vpack.c.b16 %v464, %v461
        %v471 = vpack.c.b16 %v465, %v462
        %v472 = vpack.c.b16 %v466, %v463
        %v513 = vunpack.c.l.b16 %v387
        %v514 = vunpack.c.h.b16 %v387
        %v515 = vunpack.c.l.b16 %v388
        %v516 = vunpack.c.h.b16 %v388
        %v517 = vunpack.c.l.b16 %v389
        %v518 = vunpack.c.h.b16 %v389
        %v519 = vunpack.c.l.b16 %v390
        %v520 = vunpack.c.h.b16 %v390
        %v521 = vunpack.c.l.b16 %v391
        %v522 = vunpack.c.h.b16 %v391
        %v523 = vunpack.c.l.b16 %v392
        %v524 = vunpack.c.h.b16 %v392
        %v525 = vunpack.c.l.b16 %v393
        %v526 = vunpack.c.h.b16 %v393
        %v527 = vunpack.c.l.b16 %v394
        %v528 = vunpack.c.h.b16 %v394
        %v529 = vunpack.c.l.b16 %v395
        %v530 = vunpack.c.h.b16 %v395
        %v531 = vunpack.c.l.b16 %v396
        %v532 = vunpack.c.h.b16 %v396
        %v533 = vunpack.c.l.b16 %v397
        %v534 = vunpack.c.h.b16 %v397
        %v535 = vunpack.c.l.b16 %v398
        %v536 = vunpack.c.h.b16 %v398
        %v537 = vunpack.c.l.b16 %v399
        %v538 = vunpack.c.h.b16 %v399
        %v539 = vunpack.c.l.b16 %v400
        %v540 = vunpack.c.h.b16 %v400
        %v541 = vunpack.c.l.b16 %v401
        %v542 = vunpack.c.h.b16 %v401
        %v543 = vunpack.c.l.b16 %v402
        %v544 = vunpack.c.h.b16 %v402
        %v545 = vunpack.c.l.b16 %v403
        %v546 = vunpack.c.h.b16 %v403
        %v547 = vunpack.c.l.b16 %v404
        %v548 = vunpack.c.h.b16 %v404
        %v549 = vunpack.c.l.b16 %v405
        %v550 = vunpack.c.h.b16 %v405
        %v551 = vunpack.c.l.b16 %v406
        %v552 = vunpack.c.h.b16 %v406
        %v553 = vunpack.c.l.b16 %v407
        %v554 = vunpack.c.h.b16 %v407
        %v555 = vunpack.c.l.b16 %v408
        %v556 = vunpack.c.h.b16 %v408
        %v557 = vunpack.c.l.b16 %v409
        %v558 = vunpack.c.h.b16 %v409
        %v559 = vunpack.c.l.b16 %v410
        %v560 = vunpack.c.h.b16 %v410
        %v561 = vunpack.c.l.b16 %v411
        %v562 = vunpack.c.h.b16 %v411
        %v563 = vunpack.c.l.b16 %v412
        %v564 = vunpack.c.h.b16 %v412
        %v565 = vunpack.c.l.b16 %v413
        %v566 = vunpack.c.h.b16 %v413
        %v567 = vunpack.c.l.b16 %v414
        %v568 = vunpack.c.h.b16 %v414
        %v569 = vunpack.c.l.b16 %v415
        %v570 = vunpack.c.h.b16 %v415
        %v571 = vunpack.c.l.b16 %v416
        %v572 = vunpack.c.h.b16 %v416
        %v573 = vunpack.c.l.b16 %v417
        %v574 = vunpack.c.h.b16 %v417
        %v575 = vunpack.c.l.b16 %v418
        %v576 = vunpack.c.h.b16 %v418
        %v577 = vunpack.c.l.b16 %v419
        %v578 = vunpack.c.h.b16 %v419
        %v579 = vunpack.c.l.b16 %v420
        %v580 = vunpack.c.h.b16 %v420
        %v581 = vunpack.c.l.b16 %v421
        %v582 = vunpack.c.h.b16 %v421
        %v583 = vunpack.c.l.b16 %v422
        %v584 = vunpack.c.h.b16 %v422
        %v585 = vpack.c.b16 %v515, %v513
        %v586 = vpack.c.b16 %v516, %v514
        %v587 = vpack.c.b16 %v519, %v517
        %v588 = vpack.c.b16 %v520, %v518
        %v589 = vpack.c.b16 %v523, %v521
        %v590 = vpack.c.b16 %v524, %v522
        %v591 = vpack.c.b16 %v527, %v525
        %v592 = vpack.c.b16 %v528, %v526
        %v593 = vpack.c.b16 %v531, %v529
        %v594 = vpack.c.b16 %v532, %v530
        %v595 = vpack.c.b16 %v535, %v533
        %v596 = vpack.c.b16 %v536, %v534
        %v597 = vpack.c.b16 %v539, %v537
        %v598 = vpack.c.b16 %v540, %v538
        %v599 = vpack.c.b16 %v543, %v541
        %v600 = vpack.c.b16 %v544, %v542
        %v601 = vpack.c.b16 %v547, %v545
        %v602 = vpack.c.b16 %v548, %v546
        %v603 = vpack.c.b16 %v551, %v549
        %v604 = vpack.c.b16 %v552, %v550
        %v605 = vpack.c.b16 %v555, %v553
        %v606 = vpack.c.b16 %v556, %v554
        %v607 = vpack.c.b16 %v559, %v557
        %v608 = vpack.c.b16 %v560, %v558
        %v609 = vpack.c.b16 %v563, %v561
        %v610 = vpack.c.b16 %v564, %v562
        %v611 = vpack.c.b16 %v567, %v565
        %v612 = vpack.c.b16 %v568, %v566
        %v613 = vpack.c.b16 %v571, %v569
        %v614 = vpack.c.b16 %v572, %v570
        %v615 = vpack.c.b16 %v575, %v573
        %v616 = vpack.c.b16 %v576, %v574
        %v617 = vpack.c.b16 %v579, %v577
        %v618 = vpack.c.b16 %v580, %v578
        %v619 = vpack.c.b16 %v583, %v581
        %v620 = vpack.c.b16 %v584, %v582
        %vm657 = vcmask 261120
        %v659 = vsel %vm657, %v469, 0
        %v662 = vsel %vm657, %v472, 0
        %664 = vmatprep.subr.bf16.mxu0 %v586
        %665 = vmatpush1.bf16.msra.mxu0 %v585
        %666 = vmatprep.subr.bf16.mxu0 %v588
        %667 = vmatpush1.bf16.msra.mxu0 %v587
        %668 = vmatprep.subr.bf16.mxu0 %v590
        %669 = vmatpush1.bf16.msra.mxu0 %v589
        %670 = vmatprep.subr.bf16.mxu0 %v592
        %671 = vmatpush1.bf16.msra.mxu0 %v591
        %672 = vmatprep.subr.bf16.mxu0 %v594
        %673 = vmatpush1.bf16.msra.mxu0 %v593
        %674 = vmatprep.subr.bf16.mxu0 %v596
        %675 = vmatpush1.bf16.msra.mxu0 %v595
        %676 = vmatprep.subr.bf16.mxu0 %v598
        %677 = vmatpush1.bf16.msra.mxu0 %v597
        %678 = vmatprep.subr.bf16.mxu0 %v600
        %679 = vmatpush1.bf16.msra.mxu0 %v599
        %680 = vmatprep.subr.bf16.mxu0 %v602
        %681 = vmatpush1.bf16.msra.mxu0 %v601
        %682 = vmatprep.subr.bf16.mxu0 %v604
        %683 = vmatpush1.bf16.msra.mxu0 %v603
        %684 = vmatprep.subr.bf16.mxu0 %v606
        %685 = vmatpush1.bf16.msra.mxu0 %v605
        %686 = vmatprep.subr.bf16.mxu0 %v608
        %687 = vmatpush1.bf16.msra.mxu0 %v607
        %688 = vmatprep.subr.bf16.mxu0 %v610
        %689 = vmatpush1.bf16.msra.mxu0 %v609
        %690 = vmatprep.subr.bf16.mxu0 %v612
        %691 = vmatpush1.bf16.msra.mxu0 %v611
        %692 = vmatprep.subr.bf16.mxu0 %v614
        %693 = vmatpush1.bf16.msra.mxu0 %v613
        %694 = vmatprep.subr.bf16.mxu0 %v616
        %695 = vmatpush1.bf16.msra.mxu0 %v615
        %696 = vmatprep.mubr.bf16.mxu0 %v468
        %697 = vmatmul.mubr.bf16.gmra.mrb[0].mxu0 %v467
        %v698 = vpop.f32.mrb[0].mxu0
        %v699 = vadd.f32 %v430, %v698
        %v700 = vpop.f32.mrb[0].mxu0
        %v701 = vadd.f32 %v430, %v700
        %v702 = vpop.f32.mrb[0].mxu0
        %v703 = vadd.f32 %v435, %v702
        %v704 = vpop.f32.mrb[0].mxu0
        %v705 = vadd.f32 %v435, %v704
        %706 = vmatprep.mubr.bf16.mxu0 %v471
        %707 = vmatmul.mubr.bf16.gmra.mrb[0].mxu0 %v470
        %v708 = vpop.f32.mrb[0].mxu0
        %v709 = vadd.f32 %v440, %v708
        %v710 = vpop.f32.mrb[0].mxu0
        %v711 = vadd.f32 %v440, %v710
        %v712 = vpop.f32.mrb[0].mxu0
        %v713 = vadd.f32 %v445, %v712
        %v714 = vpop.f32.mrb[0].mxu0
        %v715 = vadd.f32 %v445, %v714
        %716 = vdwg.mxu0
        %717 = vmatprep.subr.bf16.mxu0 %v618
        %718 = vmatpush1.bf16.msra.mxu0 %v617
        %719 = vmatprep.subr.bf16.mxu0 %v620
        %720 = vmatpush1.bf16.msra.mxu0 %v619
        %721 = vmatprep.subr.bf16.mxu0 0
        %722 = vmatpush1.bf16.msra.mxu0 0
        %723 = vmatprep.subr.bf16.mxu0 0
        %724 = vmatpush1.bf16.msra.mxu0 0
        %725 = vmatprep.subr.bf16.mxu0 0
        %726 = vmatpush1.bf16.msra.mxu0 0
        %727 = vmatprep.subr.bf16.mxu0 0
        %728 = vmatpush1.bf16.msra.mxu0 0
        %729 = vmatprep.subr.bf16.mxu0 0
        %730 = vmatpush1.bf16.msra.mxu0 0
        %731 = vmatprep.subr.bf16.mxu0 0
        %732 = vmatpush1.bf16.msra.mxu0 0
        %733 = vmatprep.subr.bf16.mxu0 0
        %734 = vmatpush1.bf16.msra.mxu0 0
        %735 = vmatprep.subr.bf16.mxu0 0
        %736 = vmatpush1.bf16.msra.mxu0 0
        %737 = vmatprep.subr.bf16.mxu0 0
        %738 = vmatpush1.bf16.msra.mxu0 0
        %739 = vmatprep.subr.bf16.mxu0 0
        %740 = vmatpush1.bf16.msra.mxu0 0
        %741 = vmatprep.subr.bf16.mxu0 0
        %742 = vmatpush1.bf16.msra.mxu0 0
        %743 = vmatprep.subr.bf16.mxu0 0
        %744 = vmatpush1.bf16.msra.mxu0 0
        %745 = vmatprep.subr.bf16.mxu0 0
        %746 = vmatpush1.bf16.msra.mxu0 0
        %747 = vmatprep.subr.bf16.mxu0 0
        %748 = vmatpush1.bf16.msra.mxu0 0
        %749 = vmatprep.mubr.bf16.mxu0 0
        %750 = vmatmul.mubr.bf16.gmra.mrb[0].mxu0 %v659
        %v751 = vpop.f32.mrb[0].mxu0
        %v752 = vadd.f32 %v699, %v751
        %v753 = vpop.f32.mrb[0].mxu0
        %v754 = vadd.f32 %v701, %v753
        %v755 = vpop.f32.mrb[0].mxu0
        %v756 = vadd.f32 %v703, %v755
        %v757 = vpop.f32.mrb[0].mxu0
        %v758 = vadd.f32 %v705, %v757
        %759 = vmatprep.mubr.bf16.mxu0 0
        %760 = vmatmul.mubr.bf16.gmra.mrb[0].mxu0 %v662
        %v761 = vpop.f32.mrb[0].mxu0
        %v762 = vadd.f32 %v709, %v761
        %v763 = vpop.f32.mrb[0].mxu0
        %v764 = vadd.f32 %v711, %v763
        %v765 = vpop.f32.mrb[0].mxu0
        %v766 = vadd.f32 %v713, %v765
        %v767 = vpop.f32.mrb[0].mxu0
        %v768 = vadd.f32 %v715, %v767
        %769 = vdwg.mxu0
        %vm770 = vcmp.gt.f32.partialorder %v752, 0.0
        %vm771 = vcmp.gt.f32.partialorder %v754, 0.0
        %vm772 = vcmp.gt.f32.partialorder %v756, 0.0
        %vm773 = vcmp.gt.f32.partialorder %v758, 0.0
        %vm774 = vcmp.gt.f32.partialorder %v762, 0.0
        %vm775 = vcmp.gt.f32.partialorder %v764, 0.0
        %vm776 = vcmp.gt.f32.partialorder %v766, 0.0
        %vm777 = vcmp.gt.f32.partialorder %v768, 0.0
        %v778 = vld [vmem:[%s5] sm:$0xff]
        %v779 = vld [vmem:[%s5 + $0x8] sm:$0xff]
        %v780 = vld [vmem:[%s5 + $0x10] sm:$0xff]
        %v781 = vld [vmem:[%s5 + $0x18] sm:$0xff]
        %783 = vset.pattern.permute.xlu0 0
        %784 = vperm.xlu0 %783, %v778
        %v785 = vpop.permute.xlu0 %784
        %788 = vset.pattern.permute.xlu0 0
        %789 = vperm.xlu0 %788, %v779
        %v790 = vpop.permute.xlu0 %789
        %793 = vset.pattern.permute.xlu0 0
        %794 = vperm.xlu0 %793, %v780
        %v795 = vpop.permute.xlu0 %794
        %798 = vset.pattern.permute.xlu0 0
        %799 = vperm.xlu0 %798, %v781
        %v800 = vpop.permute.xlu0 %799
        %v802 = vmul.f32 %v785, %v752
        %v803 = vmul.f32 %v785, %v754
        %v804 = vmul.f32 %v790, %v756
        %v805 = vmul.f32 %v790, %v758
        %v806 = vmul.f32 %v795, %v762
        %v807 = vmul.f32 %v795, %v764
        %v808 = vmul.f32 %v800, %v766
        %v809 = vmul.f32 %v800, %v768
        %v810 = vsel %vm770, %v752, %v802
        %v811 = vsel %vm771, %v754, %v803
        %v812 = vsel %vm772, %v756, %v804
        %v813 = vsel %vm773, %v758, %v805
        %v814 = vsel %vm774, %v762, %v806
        %v815 = vsel %vm775, %v764, %v807
        %v816 = vsel %vm776, %v766, %v808
        %v817 = vsel %vm777, %v768, %v809
        %818 = vrot.lane.b32.xlu0 %v810, 17
        %v819 = vpop.permute.xlu0 %818
        %820 = vrot.lane.b32.xlu0 %v812, 17
        %v821 = vpop.permute.xlu0 %820
        %822 = vrot.lane.b32.xlu0 %v814, 17
        %v823 = vpop.permute.xlu0 %822
        %824 = vrot.lane.b32.xlu0 %v816, 17
        %v825 = vpop.permute.xlu0 %824
        %826 = vrot.lane.b32.xlu0 %v811, 17
        %v827 = vpop.permute.xlu0 %826
        %828 = vrot.lane.b32.xlu0 %v813, 17
        %v829 = vpop.permute.xlu0 %828
        %830 = vrot.lane.b32.xlu0 %v815, 17
        %v831 = vpop.permute.xlu0 %830
        %832 = vrot.lane.b32.xlu0 %v817, 17
        %v833 = vpop.permute.xlu0 %832
        %v834 = vlaneseq
        %v835 = vand.u32 %v834, 127
        %vm836 = vcmp.lt.s32.totalorder %v835, 17
        %v837 = vsel %vm836, %v819, %v827
        %v838 = vsel %vm836, %v821, %v829
        %v839 = vsel %vm836, %v823, %v831
        %v840 = vsel %vm836, %v825, %v833
        %v841 = vsel %vm836, %v827, %v819
        %v842 = vsel %vm836, %v829, %v821
        %v843 = vsel %vm836, %v831, %v823
        %v844 = vsel %vm836, %v833, %v825
        %v845 = vld [vmem:[#allocation7] ss:$8 sm:$0x3]
        %v847 = vlaneseq
        %v848 = vshrl.u32 %v847, 7
        %v849 = vsub.s32 0, %v848
        %v850 = vrot.slane %v845, %v849
        %v851 = vlaneseq
        %v852 = vshrl.u32 %v851, 7
        %v853 = vsub.s32 1, %v852
        %v854 = vrot.slane %v845, %v853
        %v857 = vmul.f32 %v841, %v850
        %v858 = vmul.f32 %v837, %v854
        %v859 = vmul.f32 %v842, %v850
        %v860 = vmul.f32 %v838, %v854
        %v861 = vmul.f32 %v843, %v850
        %v862 = vmul.f32 %v839, %v854
        %v863 = vmul.f32 %v844, %v850
        %v864 = vmul.f32 %v840, %v854
        %v865 = vpack.c.bf16 %v859, %v857
        %v866 = vpack.c.bf16 %v860, %v858
        %v867 = vpack.c.bf16 %v863, %v861
        %v868 = vpack.c.bf16 %v864, %v862
        %869 = vrot.lane.b32.xlu0 %v810, 16
        %v870 = vpop.permute.xlu0 %869
        %871 = vrot.lane.b32.xlu0 %v812, 16
        %v872 = vpop.permute.xlu0 %871
        %873 = vrot.lane.b32.xlu0 %v814, 16
        %v874 = vpop.permute.xlu0 %873
        %875 = vrot.lane.b32.xlu0 %v816, 16
        %v876 = vpop.permute.xlu0 %875
        %877 = vrot.lane.b32.xlu0 %v811, 16
        %v878 = vpop.permute.xlu0 %877
        %879 = vrot.lane.b32.xlu0 %v813, 16
        %v880 = vpop.permute.xlu0 %879
        %881 = vrot.lane.b32.xlu0 %v815, 16
        %v882 = vpop.permute.xlu0 %881
        %883 = vrot.lane.b32.xlu0 %v817, 16
        %v884 = vpop.permute.xlu0 %883
        %vm885 = vcmp.lt.s32.totalorder %v835, 16
        %v886 = vsel %vm885, %v870, %v878
        %v887 = vsel %vm885, %v872, %v880
        %v888 = vsel %vm885, %v874, %v882
        %v889 = vsel %vm885, %v876, %v884
        %v890 = vsel %vm885, %v878, %v870
        %v891 = vsel %vm885, %v880, %v872
        %v892 = vsel %vm885, %v882, %v874
        %v893 = vsel %vm885, %v884, %v876
        %s894 = scalar_lea.vmem [#allocation7], 1
        %v895 = vld [vmem:[%s894] ss:$8 sm:$0x3]
        %v897 = vlaneseq
        %v898 = vshrl.u32 %v897, 7
        %v899 = vsub.s32 0, %v898
        %v900 = vrot.slane %v895, %v899
        %v901 = vlaneseq
        %v902 = vshrl.u32 %v901, 7
        %v903 = vsub.s32 1, %v902
        %v904 = vrot.slane %v895, %v903
        %v907 = vmul.f32 %v890, %v900
        %v908 = vmul.f32 %v886, %v904
        %v909 = vmul.f32 %v891, %v900
        %v910 = vmul.f32 %v887, %v904
        %v911 = vmul.f32 %v892, %v900
        %v912 = vmul.f32 %v888, %v904
        %v913 = vmul.f32 %v893, %v900
        %v914 = vmul.f32 %v889, %v904
        %v915 = vpack.c.bf16 %v909, %v907
        %v916 = vpack.c.bf16 %v910, %v908
        %v917 = vpack.c.bf16 %v913, %v911
        %v918 = vpack.c.bf16 %v914, %v912
        %919 = vrot.lane.b32.xlu0 %v810, 15
        %v920 = vpop.permute.xlu0 %919
        %921 = vrot.lane.b32.xlu0 %v812, 15
        %v922 = vpop.permute.xlu0 %921
        %923 = vrot.lane.b32.xlu0 %v814, 15
        %v924 = vpop.permute.xlu0 %923
        %925 = vrot.lane.b32.xlu0 %v816, 15
        %v926 = vpop.permute.xlu0 %925
        %927 = vrot.lane.b32.xlu0 %v811, 15
        %v928 = vpop.permute.xlu0 %927
        %929 = vrot.lane.b32.xlu0 %v813, 15
        %v930 = vpop.permute.xlu0 %929
        %931 = vrot.lane.b32.xlu0 %v815, 15
        %v932 = vpop.permute.xlu0 %931
        %933 = vrot.lane.b32.xlu0 %v817, 15
        %v934 = vpop.permute.xlu0 %933
        %vm935 = vcmp.lt.s32.totalorder %v835, 15
        %v936 = vsel %vm935, %v920, %v928
        %v937 = vsel %vm935, %v922, %v930
        %v938 = vsel %vm935, %v924, %v932
        %v939 = vsel %vm935, %v926, %v934
        %v940 = vsel %vm935, %v928, %v920
        %v941 = vsel %vm935, %v930, %v922
        %v942 = vsel %vm935, %v932, %v924
        %v943 = vsel %vm935, %v934, %v926
        %s944 = scalar_lea.vmem [#allocation7], 2
        %v945 = vld [vmem:[%s944] ss:$8 sm:$0x3]
        %v947 = vlaneseq
        %v948 = vshrl.u32 %v947, 7
        %v949 = vsub.s32 0, %v948
        %v950 = vrot.slane %v945, %v949
        %v951 = vlaneseq
        %v952 = vshrl.u32 %v951, 7
        %v953 = vsub.s32 1, %v952
        %v954 = vrot.slane %v945, %v953
        %v957 = vmul.f32 %v940, %v950
        %v958 = vmul.f32 %v936, %v954
        %v959 = vmul.f32 %v941, %v950
        %v960 = vmul.f32 %v937, %v954
        %v961 = vmul.f32 %v942, %v950
        %v962 = vmul.f32 %v938, %v954
        %v963 = vmul.f32 %v943, %v950
        %v964 = vmul.f32 %v939, %v954
        %v965 = vpack.c.bf16 %v959, %v957
        %v966 = vpack.c.bf16 %v960, %v958
        %v967 = vpack.c.bf16 %v963, %v961
        %v968 = vpack.c.bf16 %v964, %v962
        %969 = vrot.lane.b32.xlu0 %v810, 1
        %v970 = vpop.permute.xlu0 %969
        %971 = vrot.lane.b32.xlu0 %v812, 1
        %v972 = vpop.permute.xlu0 %971
        %973 = vrot.lane.b32.xlu0 %v814, 1
        %v974 = vpop.permute.xlu0 %973
        %975 = vrot.lane.b32.xlu0 %v816, 1
        %v976 = vpop.permute.xlu0 %975
        %977 = vrot.lane.b32.xlu0 %v811, 1
        %v978 = vpop.permute.xlu0 %977
        %979 = vrot.lane.b32.xlu0 %v813, 1
        %v980 = vpop.permute.xlu0 %979
        %981 = vrot.lane.b32.xlu0 %v815, 1
        %v982 = vpop.permute.xlu0 %981
        %983 = vrot.lane.b32.xlu0 %v817, 1
        %v984 = vpop.permute.xlu0 %983
        %vm985 = vcmp.lt.s32.totalorder %v835, 1
        %v986 = vsel %vm985, %v970, %v978
        %v987 = vsel %vm985, %v972, %v980
        %v988 = vsel %vm985, %v974, %v982
        %v989 = vsel %vm985, %v976, %v984
        %v990 = vsel %vm985, %v978, %v970
        %v991 = vsel %vm985, %v980, %v972
        %v992 = vsel %vm985, %v982, %v974
        %v993 = vsel %vm985, %v984, %v976
        %s994 = scalar_lea.vmem [#allocation7], 3
        %v995 = vld [vmem:[%s994] ss:$8 sm:$0x3]
        %v997 = vlaneseq
        %v998 = vshrl.u32 %v997, 7
        %v999 = vsub.s32 0, %v998
        %v1000 = vrot.slane %v995, %v999
        %v1001 = vlaneseq
        %v1002 = vshrl.u32 %v1001, 7
        %v1003 = vsub.s32 1, %v1002
        %v1004 = vrot.slane %v995, %v1003
        %v1007 = vmul.f32 %v990, %v1000
        %v1008 = vmul.f32 %v986, %v1004
        %v1009 = vmul.f32 %v991, %v1000
        %v1010 = vmul.f32 %v987, %v1004
        %v1011 = vmul.f32 %v992, %v1000
        %v1012 = vmul.f32 %v988, %v1004
        %v1013 = vmul.f32 %v993, %v1000
        %v1014 = vmul.f32 %v989, %v1004
        %v1015 = vpack.c.bf16 %v1009, %v1007
        %v1016 = vpack.c.bf16 %v1010, %v1008
        %v1017 = vpack.c.bf16 %v1013, %v1011
        %v1018 = vpack.c.bf16 %v1014, %v1012
        %s1019 = scalar_lea.vmem [#allocation7], 4
        %v1020 = vld [vmem:[%s1019] ss:$8 sm:$0x3]
        %v1022 = vlaneseq
        %v1023 = vshrl.u32 %v1022, 7
        %v1024 = vsub.s32 0, %v1023
        %v1025 = vrot.slane %v1020, %v1024
        %v1026 = vlaneseq
        %v1027 = vshrl.u32 %v1026, 7
        %v1028 = vsub.s32 1, %v1027
        %v1029 = vrot.slane %v1020, %v1028
        %v1032 = vmul.f32 %v810, %v1025
        %v1033 = vmul.f32 %v811, %v1029
        %v1034 = vmul.f32 %v812, %v1025
        %v1035 = vmul.f32 %v813, %v1029
        %v1036 = vmul.f32 %v814, %v1025
        %v1037 = vmul.f32 %v815, %v1029
        %v1038 = vmul.f32 %v816, %v1025
        %v1039 = vmul.f32 %v817, %v1029
        %v1040 = vpack.c.bf16 %v1034, %v1032
        %v1041 = vpack.c.bf16 %v1035, %v1033
        %v1042 = vpack.c.bf16 %v1038, %v1036
        %v1043 = vpack.c.bf16 %v1039, %v1037
        %1044 = vrot.lane.b32.xlu0 %v810, 127
        %v1045 = vpop.permute.xlu0 %1044
        %1046 = vrot.lane.b32.xlu0 %v812, 127
        %v1047 = vpop.permute.xlu0 %1046
        %1048 = vrot.lane.b32.xlu0 %v814, 127
        %v1049 = vpop.permute.xlu0 %1048
        %1050 = vrot.lane.b32.xlu0 %v816, 127
        %v1051 = vpop.permute.xlu0 %1050
        %1052 = vrot.lane.b32.xlu0 %v811, 127
        %v1053 = vpop.permute.xlu0 %1052
        %1054 = vrot.lane.b32.xlu0 %v813, 127
        %v1055 = vpop.permute.xlu0 %1054
        %1056 = vrot.lane.b32.xlu0 %v815, 127
        %v1057 = vpop.permute.xlu0 %1056
        %1058 = vrot.lane.b32.xlu0 %v817, 127
        %v1059 = vpop.permute.xlu0 %1058
        %vm1060 = vcmp.lt.s32.totalorder %v835, 127
        %v1061 = vsel %vm1060, %v1045, %v1053
        %v1062 = vsel %vm1060, %v1047, %v1055
        %v1063 = vsel %vm1060, %v1049, %v1057
        %v1064 = vsel %vm1060, %v1051, %v1059
        %v1065 = vsel %vm1060, %v1053, %v1045
        %v1066 = vsel %vm1060, %v1055, %v1047
        %v1067 = vsel %vm1060, %v1057, %v1049
        %v1068 = vsel %vm1060, %v1059, %v1051
        %s1069 = scalar_lea.vmem [#allocation7], 5
        %v1070 = vld [vmem:[%s1069] ss:$8 sm:$0x3]
        %v1072 = vlaneseq
        %v1073 = vshrl.u32 %v1072, 7
        %v1074 = vsub.s32 0, %v1073
        %v1075 = vrot.slane %v1070, %v1074
        %v1076 = vlaneseq
        %v1077 = vshrl.u32 %v1076, 7
        %v1078 = vsub.s32 1, %v1077
        %v1079 = vrot.slane %v1070, %v1078
        %v1082 = vmul.f32 %v1061, %v1075
        %v1083 = vmul.f32 %v1065, %v1079
        %v1084 = vmul.f32 %v1062, %v1075
        %v1085 = vmul.f32 %v1066, %v1079
        %v1086 = vmul.f32 %v1063, %v1075
        %v1087 = vmul.f32 %v1067, %v1079
        %v1088 = vmul.f32 %v1064, %v1075
        %v1089 = vmul.f32 %v1068, %v1079
        %v1090 = vpack.c.bf16 %v1084, %v1082
        %v1091 = vpack.c.bf16 %v1085, %v1083
        %v1092 = vpack.c.bf16 %v1088, %v1086
        %v1093 = vpack.c.bf16 %v1089, %v1087
        %1094 = vrot.lane.b32.xlu0 %v810, 113
        %v1095 = vpop.permute.xlu0 %1094
        %1096 = vrot.lane.b32.xlu0 %v812, 113
        %v1097 = vpop.permute.xlu0 %1096
        %1098 = vrot.lane.b32.xlu0 %v814, 113
        %v1099 = vpop.permute.xlu0 %1098
        %1100 = vrot.lane.b32.xlu0 %v816, 113
        %v1101 = vpop.permute.xlu0 %1100
        %1102 = vrot.lane.b32.xlu0 %v811, 113
        %v1103 = vpop.permute.xlu0 %1102
        %1104 = vrot.lane.b32.xlu0 %v813, 113
        %v1105 = vpop.permute.xlu0 %1104
        %1106 = vrot.lane.b32.xlu0 %v815, 113
        %v1107 = vpop.permute.xlu0 %1106
        %1108 = vrot.lane.b32.xlu0 %v817, 113
        %v1109 = vpop.permute.xlu0 %1108
        %vm1110 = vcmp.lt.s32.totalorder %v835, 113
        %v1111 = vsel %vm1110, %v1095, %v1103
        %v1112 = vsel %vm1110, %v1097, %v1105
        %v1113 = vsel %vm1110, %v1099, %v1107
        %v1114 = vsel %vm1110, %v1101, %v1109
        %v1115 = vsel %vm1110, %v1103, %v1095
        %v1116 = vsel %vm1110, %v1105, %v1097
        %v1117 = vsel %vm1110, %v1107, %v1099
        %v1118 = vsel %vm1110, %v1109, %v1101
        %s1119 = scalar_lea.vmem [#allocation7], 6
        %v1120 = vld [vmem:[%s1119] ss:$8 sm:$0x3]
        %v1122 = vlaneseq
        %v1123 = vshrl.u32 %v1122, 7
        %v1124 = vsub.s32 0, %v1123
        %v1125 = vrot.slane %v1120, %v1124
        %v1126 = vlaneseq
        %v1127 = vshrl.u32 %v1126, 7
        %v1128 = vsub.s32 1, %v1127
        %v1129 = vrot.slane %v1120, %v1128
        %v1132 = vmul.f32 %v1111, %v1125
        %v1133 = vmul.f32 %v1115, %v1129
        %v1134 = vmul.f32 %v1112, %v1125
        %v1135 = vmul.f32 %v1116, %v1129
        %v1136 = vmul.f32 %v1113, %v1125
        %v1137 = vmul.f32 %v1117, %v1129
        %v1138 = vmul.f32 %v1114, %v1125
        %v1139 = vmul.f32 %v1118, %v1129
        %v1140 = vpack.c.bf16 %v1134, %v1132
        %v1141 = vpack.c.bf16 %v1135, %v1133
        %v1142 = vpack.c.bf16 %v1138, %v1136
        %v1143 = vpack.c.bf16 %v1139, %v1137
        %1144 = vrot.lane.b32.xlu0 %v810, 112
        %v1145 = vpop.permute.xlu0 %1144
        %1146 = vrot.lane.b32.xlu0 %v812, 112
        %v1147 = vpop.permute.xlu0 %1146
        %1148 = vrot.lane.b32.xlu0 %v814, 112
        %v1149 = vpop.permute.xlu0 %1148
        %1150 = vrot.lane.b32.xlu0 %v816, 112
        %v1151 = vpop.permute.xlu0 %1150
        %1152 = vrot.lane.b32.xlu0 %v811, 112
        %v1153 = vpop.permute.xlu0 %1152
        %1154 = vrot.lane.b32.xlu0 %v813, 112
        %v1155 = vpop.permute.xlu0 %1154
        %1156 = vrot.lane.b32.xlu0 %v815, 112
        %v1157 = vpop.permute.xlu0 %1156
        %1158 = vrot.lane.b32.xlu0 %v817, 112
        %v1159 = vpop.permute.xlu0 %1158
        %vm1160 = vcmp.lt.s32.totalorder %v835, 112
        %v1161 = vsel %vm1160, %v1145, %v1153
        %v1162 = vsel %vm1160, %v1147, %v1155
        %v1163 = vsel %vm1160, %v1149, %v1157
        %v1164 = vsel %vm1160, %v1151, %v1159
        %v1165 = vsel %vm1160, %v1153, %v1145
        %v1166 = vsel %vm1160, %v1155, %v1147
        %v1167 = vsel %vm1160, %v1157, %v1149
        %v1168 = vsel %vm1160, %v1159, %v1151
        %s1169 = scalar_lea.vmem [#allocation7], 7
        %v1170 = vld [vmem:[%s1169] ss:$8 sm:$0x3]
        %v1172 = vlaneseq
        %v1173 = vshrl.u32 %v1172, 7
        %v1174 = vsub.s32 0, %v1173
        %v1175 = vrot.slane %v1170, %v1174
        %v1176 = vlaneseq
        %v1177 = vshrl.u32 %v1176, 7
        %v1178 = vsub.s32 1, %v1177
        %v1179 = vrot.slane %v1170, %v1178
        %v1182 = vmul.f32 %v1161, %v1175
        %v1183 = vmul.f32 %v1165, %v1179
        %v1184 = vmul.f32 %v1162, %v1175
        %v1185 = vmul.f32 %v1166, %v1179
        %v1186 = vmul.f32 %v1163, %v1175
        %v1187 = vmul.f32 %v1167, %v1179
        %v1188 = vmul.f32 %v1164, %v1175
        %v1189 = vmul.f32 %v1168, %v1179
        %v1190 = vpack.c.bf16 %v1184, %v1182
        %v1191 = vpack.c.bf16 %v1185, %v1183
        %v1192 = vpack.c.bf16 %v1188, %v1186
        %v1193 = vpack.c.bf16 %v1189, %v1187
        %1194 = vrot.lane.b32.xlu0 %v810, 111
        %v1195 = vpop.permute.xlu0 %1194
        %1196 = vrot.lane.b32.xlu0 %v812, 111
        %v1197 = vpop.permute.xlu0 %1196
        %1198 = vrot.lane.b32.xlu0 %v814, 111
        %v1199 = vpop.permute.xlu0 %1198
        %1200 = vrot.lane.b32.xlu0 %v816, 111
        %v1201 = vpop.permute.xlu0 %1200
        %1202 = vrot.lane.b32.xlu0 %v811, 111
        %v1203 = vpop.permute.xlu0 %1202
        %1204 = vrot.lane.b32.xlu0 %v813, 111
        %v1205 = vpop.permute.xlu0 %1204
        %1206 = vrot.lane.b32.xlu0 %v815, 111
        %v1207 = vpop.permute.xlu0 %1206
        %1208 = vrot.lane.b32.xlu0 %v817, 111
        %v1209 = vpop.permute.xlu0 %1208
        %vm1210 = vcmp.lt.s32.totalorder %v835, 111
        %v1211 = vsel %vm1210, %v1195, %v1203
        %v1212 = vsel %vm1210, %v1197, %v1205
        %v1213 = vsel %vm1210, %v1199, %v1207
        %v1214 = vsel %vm1210, %v1201, %v1209
        %v1215 = vsel %vm1210, %v1203, %v1195
        %v1216 = vsel %vm1210, %v1205, %v1197
        %v1217 = vsel %vm1210, %v1207, %v1199
        %v1218 = vsel %vm1210, %v1209, %v1201
        %s1219 = scalar_lea.vmem [#allocation7], 16
        %v1220 = vld [vmem:[%s1219] ss:$8 sm:$0x3]
        %v1222 = vlaneseq
        %v1223 = vshrl.u32 %v1222, 7
        %v1224 = vsub.s32 0, %v1223
        %v1225 = vrot.slane %v1220, %v1224
        %v1226 = vlaneseq
        %v1227 = vshrl.u32 %v1226, 7
        %v1228 = vsub.s32 1, %v1227
        %v1229 = vrot.slane %v1220, %v1228
        %v1232 = vmul.f32 %v1211, %v1225
        %v1233 = vmul.f32 %v1215, %v1229
        %v1234 = vmul.f32 %v1212, %v1225
        %v1235 = vmul.f32 %v1216, %v1229
        %v1236 = vmul.f32 %v1213, %v1225
        %v1237 = vmul.f32 %v1217, %v1229
        %v1238 = vmul.f32 %v1214, %v1225
        %v1239 = vmul.f32 %v1218, %v1229
        %v1240 = vpack.c.bf16 %v1234, %v1232
        %v1241 = vpack.c.bf16 %v1235, %v1233
        %v1242 = vpack.c.bf16 %v1238, %v1236
        %v1243 = vpack.c.bf16 %v1239, %v1237
        %v1244 = vld [vmem:[%s3] sm:$0xff]
        %v1245 = vld [vmem:[%s3 + $0x8] sm:$0xf]
        %v1246 = vld [vmem:[%s3 + $0xc] sm:$0xff]
        %v1247 = vld [vmem:[%s3 + $0x14] sm:$0xf]
        %v1248 = vld [vmem:[%s3 + $0x18] sm:$0xff]
        %v1249 = vld [vmem:[%s3 + $0x20] sm:$0xf]
        %v1250 = vld [vmem:[%s3 + $0x24] sm:$0xff]
        %v1251 = vld [vmem:[%s3 + $0x2c] sm:$0xf]
        %v1252 = vld [vmem:[%s6] sm:$0xff]
        %v1253 = vld [vmem:[%s6 + $0x8] sm:$0xff]
        %v1254 = vld [vmem:[%s6 + $0x10] sm:$0xff]
        %v1255 = vld [vmem:[%s6 + $0x18] sm:$0xff]
        %1257 = vset.pattern.permute.xlu0 0
        %1258 = vperm.xlu0 %1257, %v1252
        %v1259 = vpop.permute.xlu0 %1258
        %1262 = vset.pattern.permute.xlu0 0
        %1263 = vperm.xlu0 %1262, %v1253
        %v1264 = vpop.permute.xlu0 %1263
        %1267 = vset.pattern.permute.xlu0 0
        %1268 = vperm.xlu0 %1267, %v1254
        %v1269 = vpop.permute.xlu0 %1268
        %1272 = vset.pattern.permute.xlu0 0
        %1273 = vperm.xlu0 %1272, %v1255
        %v1274 = vpop.permute.xlu0 %1273
        %v1284 = vunpack.c.l.b16 %v1244
        %v1285 = vunpack.c.h.b16 %v1244
        %v1286 = vunpack.c.l.b16 %v1245
        %v1287 = vunpack.c.l.b16 %v1246
        %v1288 = vunpack.c.h.b16 %v1246
        %v1289 = vunpack.c.l.b16 %v1247
        %v1290 = vunpack.c.l.b16 %v1248
        %v1291 = vunpack.c.h.b16 %v1248
        %v1292 = vunpack.c.l.b16 %v1249
        %v1293 = vunpack.c.l.b16 %v1250
        %v1294 = vunpack.c.h.b16 %v1250
        %v1295 = vunpack.c.l.b16 %v1251
        %v1296 = vpack.c.b16 %v1287, %v1284
        %v1297 = vpack.c.b16 %v1288, %v1285
        %v1298 = vpack.c.b16 %v1289, %v1286
        %v1299 = vpack.c.b16 %v1293, %v1290
        %v1300 = vpack.c.b16 %v1294, %v1291
        %v1301 = vpack.c.b16 %v1295, %v1292
        %v1307 = vsel %vm657, %v1298, 0
        %v1310 = vsel %vm657, %v1301, 0
        %1312 = vmatprep.subr.bf16.mxu0 %v866
        %1313 = vmatpush1.bf16.msra.mxu0 %v865
        %1314 = vmatprep.subr.bf16.mxu0 %v868
        %1315 = vmatpush1.bf16.msra.mxu0 %v867
        %1316 = vmatprep.subr.bf16.mxu0 %v916
        %1317 = vmatpush1.bf16.msra.mxu0 %v915
        %1318 = vmatprep.subr.bf16.mxu0 %v918
        %1319 = vmatpush1.bf16.msra.mxu0 %v917
        %1320 = vmatprep.subr.bf16.mxu0 %v966
        %1321 = vmatpush1.bf16.msra.mxu0 %v965
        %1322 = vmatprep.subr.bf16.mxu0 %v968
        %1323 = vmatpush1.bf16.msra.mxu0 %v967
        %1324 = vmatprep.subr.bf16.mxu0 %v1016
        %1325 = vmatpush1.bf16.msra.mxu0 %v1015
        %1326 = vmatprep.subr.bf16.mxu0 %v1018
        %1327 = vmatpush1.bf16.msra.mxu0 %v1017
        %1328 = vmatprep.subr.bf16.mxu0 %v1041
        %1329 = vmatpush1.bf16.msra.mxu0 %v1040
        %1330 = vmatprep.subr.bf16.mxu0 %v1043
        %1331 = vmatpush1.bf16.msra.mxu0 %v1042
        %1332 = vmatprep.subr.bf16.mxu0 %v1091
        %1333 = vmatpush1.bf16.msra.mxu0 %v1090
        %1334 = vmatprep.subr.bf16.mxu0 %v1093
        %1335 = vmatpush1.bf16.msra.mxu0 %v1092
        %1336 = vmatprep.subr.bf16.mxu0 %v1141
        %1337 = vmatpush1.bf16.msra.mxu0 %v1140
        %1338 = vmatprep.subr.bf16.mxu0 %v1143
        %1339 = vmatpush1.bf16.msra.mxu0 %v1142
        %1340 = vmatprep.subr.bf16.mxu0 %v1191
        %1341 = vmatpush1.bf16.msra.mxu0 %v1190
        %1342 = vmatprep.subr.bf16.mxu0 %v1193
        %1343 = vmatpush1.bf16.msra.mxu0 %v1192
        %1344 = vmatprep.mubr.bf16.mxu0 %v1297
        %1345 = vmatmul.mubr.bf16.gmra.mrb[0].mxu0 %v1296
        %v1346 = vpop.f32.mrb[0].mxu0
        %v1347 = vadd.f32 %v1259, %v1346
        %v1348 = vpop.f32.mrb[0].mxu0
        %v1349 = vadd.f32 %v1259, %v1348
        %v1350 = vpop.f32.mrb[0].mxu0
        %v1351 = vadd.f32 %v1264, %v1350
        %v1352 = vpop.f32.mrb[0].mxu0
        %v1353 = vadd.f32 %v1264, %v1352
        %1354 = vmatprep.mubr.bf16.mxu0 %v1300
        %1355 = vmatmul.mubr.bf16.gmra.mrb[0].mxu0 %v1299
        %v1356 = vpop.f32.mrb[0].mxu0
        %v1357 = vadd.f32 %v1269, %v1356
        %v1358 = vpop.f32.mrb[0].mxu0
        %v1359 = vadd.f32 %v1269, %v1358
        %v1360 = vpop.f32.mrb[0].mxu0
        %v1361 = vadd.f32 %v1274, %v1360
        %v1362 = vpop.f32.mrb[0].mxu0
        %v1363 = vadd.f32 %v1274, %v1362
        %1364 = vdwg.mxu0
        %1365 = vmatprep.subr.bf16.mxu0 %v1241
        %1366 = vmatpush1.bf16.msra.mxu0 %v1240
        %1367 = vmatprep.subr.bf16.mxu0 %v1243
        %1368 = vmatpush1.bf16.msra.mxu0 %v1242
        %1369 = vmatprep.subr.bf16.mxu0 0
        %1370 = vmatpush1.bf16.msra.mxu0 0
        %1371 = vmatprep.subr.bf16.mxu0 0
        %1372 = vmatpush1.bf16.msra.mxu0 0
        %1373 = vmatprep.subr.bf16.mxu0 0
        %1374 = vmatpush1.bf16.msra.mxu0 0
        %1375 = vmatprep.subr.bf16.mxu0 0
        %1376 = vmatpush1.bf16.msra.mxu0 0
        %1377 = vmatprep.subr.bf16.mxu0 0
        %1378 = vmatpush1.bf16.msra.mxu0 0
        %1379 = vmatprep.subr.bf16.mxu0 0
        %1380 = vmatpush1.bf16.msra.mxu0 0
        %1381 = vmatprep.subr.bf16.mxu0 0
        %1382 = vmatpush1.bf16.msra.mxu0 0
        %1383 = vmatprep.subr.bf16.mxu0 0
        %1384 = vmatpush1.bf16.msra.mxu0 0
        %1385 = vmatprep.subr.bf16.mxu0 0
        %1386 = vmatpush1.bf16.msra.mxu0 0
        %1387 = vmatprep.subr.bf16.mxu0 0
        %1388 = vmatpush1.bf16.msra.mxu0 0
        %1389 = vmatprep.subr.bf16.mxu0 0
        %1390 = vmatpush1.bf16.msra.mxu0 0
        %1391 = vmatprep.subr.bf16.mxu0 0
        %1392 = vmatpush1.bf16.msra.mxu0 0
        %1393 = vmatprep.subr.bf16.mxu0 0
        %1394 = vmatpush1.bf16.msra.mxu0 0
        %1395 = vmatprep.subr.bf16.mxu0 0
        %1396 = vmatpush1.bf16.msra.mxu0 0
        %1397 = vmatprep.mubr.bf16.mxu0 0
        %1398 = vmatmul.mubr.bf16.gmra.mrb[0].mxu0 %v1307
        %v1399 = vpop.f32.mrb[0].mxu0
        %v1400 = vadd.f32 %v1347, %v1399
        %v1401 = vpop.f32.mrb[0].mxu0
        %v1402 = vadd.f32 %v1349, %v1401
        %v1403 = vpop.f32.mrb[0].mxu0
        %v1404 = vadd.f32 %v1351, %v1403
        %v1405 = vpop.f32.mrb[0].mxu0
        %v1406 = vadd.f32 %v1353, %v1405
        %1407 = vmatprep.mubr.bf16.mxu0 0
        %1408 = vmatmul.mubr.bf16.gmra.mrb[0].mxu0 %v1310
        %v1409 = vpop.f32.mrb[0].mxu0
        %v1410 = vadd.f32 %v1357, %v1409
        %v1411 = vpop.f32.mrb[0].mxu0
        %v1412 = vadd.f32 %v1359, %v1411
        %v1413 = vpop.f32.mrb[0].mxu0
        %v1414 = vadd.f32 %v1361, %v1413
        %v1415 = vpop.f32.mrb[0].mxu0
        %v1416 = vadd.f32 %v1363, %v1415
        %1417 = vdwg.mxu0
        %v1418 = vld [vmem:[%s336] sm:$0xff]
        %v1419 = vld [vmem:[%s336 + $0x8] sm:$0xff]
        %v1420 = vld [vmem:[%s336 + $0x10] sm:$0xff]
        %v1421 = vld [vmem:[%s336 + $0x18] sm:$0xff]
        %v1422 = vld [vmem:[%s336 + $0x20] sm:$0xff]
        %v1423 = vld [vmem:[%s336 + $0x28] sm:$0xff]
        %v1424 = vld [vmem:[%s336 + $0x30] sm:$0xff]
        %v1425 = vld [vmem:[%s336 + $0x38] sm:$0xff]
        %v1426 = vadd.f32 %v1400, %v1418
        %v1427 = vadd.f32 %v1402, %v1419
        %v1428 = vadd.f32 %v1404, %v1420
        %v1429 = vadd.f32 %v1406, %v1421
        %v1430 = vadd.f32 %v1410, %v1422
        %v1431 = vadd.f32 %v1412, %v1423
        %v1432 = vadd.f32 %v1414, %v1424
        %v1433 = vadd.f32 %v1416, %v1425
        %1434 = vst [vmem:[%s377] sm:$0xff] %v1426
        %1435 = vst [vmem:[%s377 + $0x8] sm:$0xff] %v1427
        %1436 = vst [vmem:[%s377 + $0x10] sm:$0xff] %v1428
        %1437 = vst [vmem:[%s377 + $0x18] sm:$0xff] %v1429
        %1438 = vst [vmem:[%s377 + $0x20] sm:$0xff] %v1430
        %1439 = vst [vmem:[%s377 + $0x28] sm:$0xff] %v1431
        %1440 = vst [vmem:[%s377 + $0x30] sm:$0xff] %v1432
        %1441 = vst [vmem:[%s377 + $0x38] sm:$0xff] %v1433
        %s1442 = sand.u32 %s214, 1
        %s1443 = scalar_lea.sflag [#allocation4], %s1442
        %s1444 = sand.u32 %s214, 1
        %s1445 = smul.addr %s1444, 64
        %s1446 = scalar_lea.vmem [#allocation8], %s1445
        // Predicated region
        $region65: #{tpu_custom_call.1} parent=51 // pred_check
          %p1447 = pneg %p224
        $region66: #{tpu_custom_call.1} parent=51 // pred_check_branch
          %1449 = sbr.rel (%p1447) target = $region68
        $region67: #{tpu_custom_call.1} parent=51 // pred_region
          %s1451 = ssub.s32 1024, 1024
          %1452 = vsyncadd %s1443, %s1451
          %s1453 = smul.addr %s28, 8
          %s1454 = smul.addr %s1453, 128
          %s1455 = scalar_lea.hbm %s8, %s1454
          %s1456 = sshll.u32 %s1446, 4
          %s1457 = int_to_ptr.vmem [resolvable:$true] %s1456
          %1462 = dma.vmem_to_hbm [thread:$0]  %s1457, 1024, %s1455, %s1443, 256, 256, 16
        $region68: #{tpu_custom_call.1} parent=51 // pred_fallthru
          _
      $region52: #{tpu_custom_call.1} parent=5 // pred_fallthru
        _
      %p1463 = scmp.le.s32.totalorder 2, %s23
      // Predicated region
      $region69: #{tpu_custom_call.1} parent=5 // pred_check
        %p1464 = pneg %p1463
      $region70: #{tpu_custom_call.1} parent=5 // pred_check_branch
        %1466 = sbr.rel (%p1464) target = $region72
      $region71: #{tpu_custom_call.1} parent=5 // pred_region
        %s1467 = ssub.s32 %s23, 2
        // Predicated region
        $region73: #{tpu_custom_call.1} parent=71 // pred_check
          %p1468 = pneg %p230
        $region74: #{tpu_custom_call.1} parent=71 // pred_check_branch
          %1470 = sbr.rel (%p1468) target = $region76
        $region75: #{tpu_custom_call.1} parent=71 // pred_region
          %s1471 = sand.u32 %s215, 1
          %s1472 = scalar_lea.sflag [#allocation4], %s1471
          %s1473 = sand.u32 %s215, 1
          %s1474 = smul.addr %s1473, 64
          %s1475 = scalar_lea.vmem [#allocation8], %s1474
          %1476 = dma.done %s1472, 1024
        $region76: #{tpu_custom_call.1} parent=71 // pred_fallthru
          _
      $region72: #{tpu_custom_call.1} parent=5 // pred_fallthru
        _
    $region6: #{tpu_custom_call.1} parent=1 // loop_footer
      %s27 = sadd.s32 1, %s23
    $region7: #{tpu_custom_call.1} parent=1 // loop_footer_branch
      %22 = sbr.rel target = $region3
    $region8: #{tpu_custom_call.1} parent=1 // loop_exit
      _
    %1477 = vsyncpa [#allocation3], 1
    %s1478 = scalar_lea.sflag [#allocation3], 1
    %1479 = vsyncpa %s1478, 1
    %1480 = vsyncpa [#allocation6], 1
    %s1481 = scalar_lea.sflag [#allocation6], 1
    %1482 = vsyncpa %s1481, 1
    %1483 = vsyncpa [#allocation4], 1
    %s1484 = scalar_lea.sflag [#allocation4], 1
    %1485 = vsyncpa %s1484, 1

</llo_original>
